<compile_context>
chip_gen: v7x
topology: tpu7x:2x2x1
jax: 0.10.0
libtpu: 0.0.40
codegen_flags: <defaults>
</compile_context>

<pallas_src>
import functools

import jax
import jax.numpy as jnp
from jax.experimental import pallas as pl
from jax.experimental.pallas import tpu as pltpu

EPS = 1e-5
_LANE = 128
_SUBLANE = 8


def _round_up(x, m):
    return (x + m - 1) // m * m


@functools.lru_cache(maxsize=None)
def _vmem_cap_bytes():
    """Device VMEM budget with ~15% headroom for compiler-internal scratch."""
    try:
        return max(int(pltpu.get_tpu_info().vmem_capacity_bytes * 0.85), 16 * 1024 * 1024)
    except Exception:  # interpret mode / no TPU visible: conservative cross-generation default
        return 64 * 1024 * 1024


def _vmem_limit(working_set_bytes):
    """Only override the conservative scoped-VMEM default when the pipeline needs it."""
    if working_set_bytes <= 16 * 1024 * 1024:
        return None
    return min(int(working_set_bytes * 1.25), _vmem_cap_bytes())


def _row_mask_col(tile_rows, row_offset, b_true):
    """(tile_rows, 1) f32 mask selecting rows that belong to the real (unpadded) batch."""
    rows = jax.lax.broadcasted_iota(jnp.int32, (tile_rows, 1), 0) + row_offset
    return (rows < b_true).astype(jnp.float32)


def _fold_bn_relu_into(a_ref, z_ref, psum_ref, psq_ref, gamma_ref, beta_ref, b_true):
    """a_ref <- relu(BN(z_ref)) using the previous stage's per-tile column sums (all f32 math)."""
    inv_n = 1.0 / b_true
    mu = jnp.sum(psum_ref[...], axis=0) * inv_n                  # (1, H)
    ex2 = jnp.sum(psq_ref[...], axis=0) * inv_n
    var = jnp.maximum(ex2 - mu * mu, 0.0)                        # biased variance, clamped
    scale = gamma_ref[...] * jax.lax.rsqrt(var + EPS)
    shift = beta_ref[...] - mu * scale
    a = jnp.maximum(z_ref[...].astype(jnp.float32) * scale + shift, 0.0)
    a_ref[...] = a.astype(a_ref.dtype)


# ----------------------------------------------------------------------------------------------
# Tiled-path kernels
# ----------------------------------------------------------------------------------------------
def _embed_linear1_kernel(x_ref, wemb_ref, bemb_ref, w1_ref,
                          z1_ref, sum_ref, sq_ref, acc_ref, *, b_true):
    """z1 = (x @ wemb + bemb) @ w1 (K-tiled, f32 accumulator) + masked column sum / sum-of-sq."""
    # NOTE: program_id must be bound at the top level (not inside pl.when bodies).
    i = pl.program_id(0)          # batch tile
    k = pl.program_id(1)          # K (feature) slab of the embedding contraction
    nk = pl.num_programs(1)

    @pl.when(k == 0)
    def _():
        acc_ref[...] = jnp.zeros_like(acc_ref)

    # Stream one K-slab of x / wemb through the MXU; x is cast to bf16 on the VPU in-kernel.
    acc_ref[...] += jnp.dot(x_ref[...].astype(wemb_ref.dtype), wemb_ref[...],
                            preferred_element_type=jnp.float32)

    @pl.when(k == nk - 1)
    def _():
        h = acc_ref[...] + bemb_ref[...]                                   # (bt, D) f32
        z1 = jnp.dot(h.astype(w1_ref.dtype), w1_ref[...],
                     preferred_element_type=jnp.float32)                   # (bt, H) f32
        z1_b = z1.astype(z1_ref.dtype)                                     # bf16 inter-stage store
        z1_ref[...] = z1_b

        # Stats on the value as stored so stage 2 normalizes exactly what it reads back.
        zf = z1_b.astype(jnp.float32)
        bt = zf.shape[0]
        m = _row_mask_col(bt, i * bt, b_true)                              # (bt, 1)
        sum_ref[...] = jnp.sum(zf * m, axis=0, keepdims=True).reshape(sum_ref.shape)
        sq_ref[...] = jnp.sum(zf * zf * m, axis=0, keepdims=True).reshape(sq_ref.shape)


def _bn_relu_linear_stats_kernel(z_ref, psum_ref, psq_ref, gamma_ref, beta_ref, w_ref,
                                 out_ref, sum_ref, sq_ref, a_ref, *, b_true):
    """out[:, j-tile] = relu(BN(z)) @ w[:, j-tile], plus masked column stats of the output."""
    i = pl.program_id(0)          # batch tile
    j = pl.program_id(1)          # output-column (N) tile

    @pl.when(j == 0)
    def _():
        # Fold full-batch BN (from partial sums) + ReLU once per batch tile into bf16 scratch.
        _fold_bn_relu_into(a_ref, z_ref, psum_ref, psq_ref, gamma_ref, beta_ref, b_true)

    z = jnp.dot(a_ref[...], w_ref[...], preferred_element_type=jnp.float32)   # (bt, tn)
    z_b = z.astype(out_ref.dtype)
    out_ref[...] = z_b

    zf = z_b.astype(jnp.float32)
    bt = zf.shape[0]
    m = _row_mask_col(bt, i * bt, b_true)
    # VPU multiply + cross-sublane reduce (keeps the MXU free for the matmuls).
    sum_ref[...] = jnp.sum(zf * m, axis=0, keepdims=True).reshape(sum_ref.shape)
    sq_ref[...] = jnp.sum(zf * zf * m, axis=0, keepdims=True).reshape(sq_ref.shape)


def _bn_relu_linear_bias_kernel(z_ref, psum_ref, psq_ref, gamma_ref, beta_ref, w_ref, bias_ref,
                                out_ref, a_ref, *, b_true):
    """out[:, j-tile] = relu(BN(z)) @ w[:, j-tile] + bias[j-tile]."""
    j = pl.program_id(1)

    @pl.when(j == 0)
    def _():
        _fold_bn_relu_into(a_ref, z_ref, psum_ref, psq_ref, gamma_ref, beta_ref, b_true)

    out = jnp.dot(a_ref[...], w_ref[...], preferred_element_type=jnp.float32) + bias_ref[...]
    out_ref[...] = out.astype(out_ref.dtype)


# ----------------------------------------------------------------------------------------------
# Fused single-launch fast path (one batch tile whose full working set fits VMEM)
# ----------------------------------------------------------------------------------------------
def _fused_kernel(x_ref, wemb_ref, bemb_ref, w1_ref, g1_ref, b1_ref,
                  w2_ref, g2_ref, b2_ref, w3_ref, b3_ref, o_ref, *, b_true):
    bt = x_ref.shape[0]
    cols = jax.lax.broadcasted_iota(jnp.int32, (1, bt), 1)
    m = (cols < b_true).astype(jnp.float32)        # (1, bt) ones-row: masked MXU column sums
    inv_n = 1.0 / b_true
    wd = wemb_ref.dtype

    def bn_relu(z, g, b):
        mu = jnp.dot(m, z, preferred_element_type=jnp.float32) * inv_n
        ex2 = jnp.dot(m, z * z, preferred_element_type=jnp.float32) * inv_n
        var = jnp.maximum(ex2 - mu * mu, 0.0)
        scale = g * jax.lax.rsqrt(var + EPS)
        return jnp.maximum(z * scale + (b - mu * scale), 0.0)

    h = jnp.dot(x_ref[...].astype(wd), wemb_ref[...],
                preferred_element_type=jnp.float32) + bemb_ref[...]
    z = bn_relu(jnp.dot(h.astype(wd), w1_ref[...], preferred_element_type=jnp.float32),
                g1_ref[...], b1_ref[...])
    z = bn_relu(jnp.dot(z.astype(wd), w2_ref[...], preferred_element_type=jnp.float32),
                g2_ref[...], b2_ref[...])
    out = jnp.dot(z.astype(wd), w3_ref[...], preferred_element_type=jnp.float32) + b3_ref[...]
    o_ref[...] = out.astype(o_ref.dtype)


# ----------------------------------------------------------------------------------------------
# Host-side wrapper
# ----------------------------------------------------------------------------------------------
def prepare_params(params, *, max_k_tile=512, weight_dtype=jnp.bfloat16):
    """One-time weight prep (MXU dtype cast + K-tiling pad), hoisted out of the per-call path."""
    wemb, bemb, w1, g1, b1, w2, g2, b2, w3, b3 = params
    F, D = wemb.shape
    H = w1.shape[1]
    f_pad = _round_up(F, _LANE)
    tk = min(max_k_tile, f_pad)
    f_pad = _round_up(f_pad, tk)
    wemb_p = wemb if f_pad == F else jnp.pad(wemb, ((0, f_pad - F), (0, 0)))
    return dict(
        F=F, D=D, H=H, f_pad=f_pad, tk=tk, weight_dtype=weight_dtype,
        wemb=wemb_p.astype(weight_dtype),
        bemb=jnp.reshape(bemb, (1, D)).astype(jnp.float32),
        w1=w1.astype(weight_dtype),
        g1=jnp.reshape(g1, (1, H)).astype(jnp.float32),
        b1=jnp.reshape(b1, (1, H)).astype(jnp.float32),
        w2=w2.astype(weight_dtype),
        g2=jnp.reshape(g2, (1, H)).astype(jnp.float32),
        b2=jnp.reshape(b2, (1, H)).astype(jnp.float32),
        w3=w3.astype(weight_dtype),
        b3=jnp.reshape(b3, (1, H)).astype(jnp.float32),
    )


def similarity_embedding(x, prep, *, max_batch_tile=256, max_n_tile=1024,
                         fused_vmem_budget=40 * 1024 * 1024):
    """SimilarityEmbedding forward. x: (B, ...) float -> (B, 4 * context_dim) f32."""
    B = x.shape[0]
    x_flat = x.reshape(B, -1)
    if x_flat.dtype != jnp.float32:
        x_flat = x_flat.astype(jnp.float32)
    F, D, H = prep["F"], prep["D"], prep["H"]
    f_pad, tk = prep["f_pad"], prep["tk"]
    assert x_flat.shape[1] == F, (x_flat.shape, F)
    wdt = prep["weight_dtype"]
    wsz = jnp.dtype(wdt).itemsize

    # ---- batch tiling: fill the 256-wide MXU (v6e/v7x), but keep >= 2 tiles when the batch
    # allows so the "parallel" axis can shard across v7x's two TensorCores. ----
    bt = min(max_batch_tile, _round_up(B, _SUBLANE))
    if B > _LANE:
        bt = min(bt, _round_up(pl.cdiv(B, 2), _SUBLANE))
    b_pad = _round_up(B, bt)
    nb = b_pad // bt
    nk = f_pad // tk

    wemb_p, bemb = prep["wemb"], prep["bemb"]
    w1, g1, b1 = prep["w1"], prep["g1"], prep["b1"]
    w2, g2, b2 = prep["w2"], prep["g2"], prep["b2"]
    w3, b3 = prep["w3"], prep["b3"]

    xp = x_flat if (b_pad == B and f_pad == F) else jnp.pad(
        x_flat, ((0, b_pad - B), (0, f_pad - F)))

    # ---------- fused fast path: one batch tile, everything resident in VMEM ----------
    fused_ws = (b_pad * f_pad * 4 + f_pad * D * wsz + D * 4
                + (D * H + 2 * H * H) * wsz + 6 * H * 4
                + b_pad * H * 4 + 4 * b_pad * max(D, H) * 4)
    if nb == 1 and fused_ws <= min(fused_vmem_budget, _vmem_cap_bytes()):
        ops = (xp, wemb_p, bemb, w1, g1, b1, w2, g2, b2, w3, b3)
        flops = 2 * b_pad * (f_pad * D + D * H + 2 * H * H) + 16 * b_pad * H
        bytes_acc = sum(int(o.size) * o.dtype.itemsize for o in ops) + b_pad * H * 4
        out = pl.pallas_call(
            functools.partial(_fused_kernel, b_true=B),
            out_shape=jax.ShapeDtypeStruct((b_pad, H), jnp.float32),
            grid=(),
            in_specs=[pl.BlockSpec(o.shape, lambda: (0, 0)) for o in ops],
            out_specs=pl.BlockSpec((b_pad, H), lambda: (0, 0)),
            compiler_params=pltpu.CompilerParams(vmem_limit_bytes=_vmem_limit(fused_ws)),
            cost_estimate=pl.CostEstimate(flops=int(flops), transcendentals=2 * H,
                                          bytes_accessed=int(bytes_acc)),
        )(*ops)
        return out if b_pad == B else out[:B]

    # ---- output-column (N) tiling of the (H, H) expander weights ----
    tn = max_n_tile if (max_n_tile % _LANE == 0 and H % max_n_tile == 0) else H
    nj = H // tn

    # ---------- stage 1: embedding (K-tiled) + expander linear 1 (+ z1 column stats) ----------
    ws1 = (2 * (bt * tk * 4 + tk * D * wsz) + 2 * (D * 4 + D * H * wsz)
           + 2 * (bt * H * wsz + 2 * H * 4) + bt * D * 4)
    flops1 = 2 * b_pad * (f_pad * D + D * H) + 6 * b_pad * H
    bytes1 = (b_pad * f_pad * 4 + nb * f_pad * D * wsz + D * 4 + D * H * wsz
              + b_pad * H * wsz + 2 * nb * H * 4)
    z1, s1, q1 = pl.pallas_call(
        functools.partial(_embed_linear1_kernel, b_true=B),
        out_shape=(jax.ShapeDtypeStruct((b_pad, H), wdt),
                   jax.ShapeDtypeStruct((nb, 1, H), jnp.float32),
                   jax.ShapeDtypeStruct((nb, 1, H), jnp.float32)),
        grid_spec=pltpu.PrefetchScalarGridSpec(
            num_scalar_prefetch=0,
            grid=(nb, nk),
            in_specs=[
                pl.BlockSpec((bt, tk), lambda i, k: (i, k)),     # x slab (f32, cast in-kernel)
                pl.BlockSpec((tk, D), lambda i, k: (k, 0)),      # wemb K-slab (streamed)
                pl.BlockSpec((1, D), lambda i, k: (0, 0)),       # bemb (resident)
                pl.BlockSpec((D, H), lambda i, k: (0, 0)),       # w1 (resident)
            ],
            out_specs=(
                pl.BlockSpec((bt, H), lambda i, k: (i, 0)),      # z1 (bf16, resident across k)
                pl.BlockSpec((1, 1, H), lambda i, k: (i, 0, 0)),
                pl.BlockSpec((1, 1, H), lambda i, k: (i, 0, 0)),
            ),
            scratch_shapes=[pltpu.VMEM((bt, D), jnp.float32)],
        ),
        compiler_params=pltpu.CompilerParams(
            dimension_semantics=("parallel", "arbitrary"),
            vmem_limit_bytes=_vmem_limit(ws1)),
        cost_estimate=pl.CostEstimate(flops=int(flops1), transcendentals=0,
                                      bytes_accessed=int(bytes1)),
    )(xp, wemb_p, bemb, w1)

    # ---------- stage 2: BN1 + ReLU + expander linear 2 (N-tiled, + z2 column stats) ----------
    ws2 = (2 * bt * H * wsz + 2 * (2 * nb * H * 4 + 2 * H * 4)
           + 2 * H * tn * wsz + 2 * (bt * tn * wsz + 2 * tn * 4) + bt * H * wsz)
    flops2 = 2 * b_pad * H * H + 10 * b_pad * H
    bytes2 = (b_pad * H * wsz + 2 * nb * H * 4 + 2 * H * 4 + nb * H * H * wsz
              + b_pad * H * wsz + 2 * nb * H * 4)
    z2, s2, q2 = pl.pallas_call(
        functools.partial(_bn_relu_linear_stats_kernel, b_true=B),
        out_shape=(jax.ShapeDtypeStruct((b_pad, H), wdt),
                   jax.ShapeDtypeStruct((nb, 1, H), jnp.float32),
                   jax.ShapeDtypeStruct((nb, 1, H), jnp.float32)),
        grid_spec=pltpu.PrefetchScalarGridSpec(
            num_scalar_prefetch=0,
            grid=(nb, nj),
            in_specs=[
                pl.BlockSpec((bt, H), lambda i, j: (i, 0)),        # z1 (resident across j)
                pl.BlockSpec((nb, 1, H), lambda i, j: (0, 0, 0)),  # z1 column-sum partials
                pl.BlockSpec((nb, 1, H), lambda i, j: (0, 0, 0)),  # z1 column-sumsq partials
                pl.BlockSpec((1, H), lambda i, j: (0, 0)),         # gamma1
                pl.BlockSpec((1, H), lambda i, j: (0, 0)),         # beta1
                pl.BlockSpec((H, tn), lambda i, j: (0, j)),        # w2 N-slab (streamed)
            ],
            out_specs=(
                pl.BlockSpec((bt, tn), lambda i, j: (i, j)),       # z2 (bf16, lane-dense)
                pl.BlockSpec((1, 1, tn), lambda i, j: (i, 0, j)),
                pl.BlockSpec((1, 1, tn), lambda i, j: (i, 0, j)),
            ),
            scratch_shapes=[pltpu.VMEM((bt, H), wdt)],             # relu(BN(z1)) per batch tile
        ),
        compiler_params=pltpu.CompilerParams(
            dimension_semantics=("parallel", "arbitrary"),
            vmem_limit_bytes=_vmem_limit(ws2)),
        cost_estimate=pl.CostEstimate(flops=int(flops2), transcendentals=nb * H,
                                      bytes_accessed=int(bytes2)),
    )(z1, s1, q1, g1, b1, w2)

    # ---------- stage 3: BN2 + ReLU + expander linear 3 (+ bias), N-tiled ----------
    ws3 = (2 * bt * H * wsz + 2 * (2 * nb * H * 4 + 2 * H * 4 + tn * 4)
           + 2 * H * tn * wsz + 2 * bt * tn * 4 + bt * H * wsz)
    flops3 = 2 * b_pad * H * H + 7 * b_pad * H
    bytes3 = (b_pad * H * wsz + 2 * nb * H * 4 + 3 * H * 4 + nb * H * H * wsz + b_pad * H * 4)
    out = pl.pallas_call(
        functools.partial(_bn_relu_linear_bias_kernel, b_true=B),
        out_shape=jax.ShapeDtypeStruct((b_pad, H), jnp.float32),
        grid_spec=pltpu.PrefetchScalarGridSpec(
            num_scalar_prefetch=0,
            grid=(nb, nj),
            in_specs=[
                pl.BlockSpec((bt, H), lambda i, j: (i, 0)),
                pl.BlockSpec((nb, 1, H), lambda i, j: (0, 0, 0)),
                pl.BlockSpec((nb, 1, H), lambda i, j: (0, 0, 0)),
                pl.BlockSpec((1, H), lambda i, j: (0, 0)),
                pl.BlockSpec((1, H), lambda i, j: (0, 0)),
                pl.BlockSpec((H, tn), lambda i, j: (0, j)),
                pl.BlockSpec((1, tn), lambda i, j: (0, j)),
            ],
            out_specs=pl.BlockSpec((bt, tn), lambda i, j: (i, j)),
            scratch_shapes=[pltpu.VMEM((bt, H), wdt)],
        ),
        compiler_params=pltpu.CompilerParams(
            dimension_semantics=("parallel", "arbitrary"),
            vmem_limit_bytes=_vmem_limit(ws3)),
        cost_estimate=pl.CostEstimate(flops=int(flops3), transcendentals=nb * H,
                                      bytes_accessed=int(bytes3)),
    )(z2, s2, q2, g2, b2, w3, b3)

    return out if b_pad == B else out[:B]


# ----------------------------------------------------------------------------------------------
# Synthetic params + pure-JAX reference
# ----------------------------------------------------------------------------------------------
def init_params(key, in_features, context_dim, expander_factor=4):
    """Deterministic synthetic parameters (shapes match the PyTorch module)."""
    hidden = context_dim * expander_factor
    ks = jax.random.split(key, 9)
    scale = 0.02
    wemb = scale * jax.random.normal(ks[0], (in_features, context_dim), jnp.float32)
    bemb = jnp.zeros((1, context_dim), jnp.float32)
    w1 = scale * jax.random.normal(ks[1], (context_dim, hidden), jnp.float32)
    g1 = 1.0 + 0.1 * jax.random.normal(ks[2], (1, hidden), jnp.float32)
    b1 = 0.1 * jax.random.normal(ks[3], (1, hidden), jnp.float32)
    w2 = scale * jax.random.normal(ks[4], (hidden, hidden), jnp.float32)
    g2 = 1.0 + 0.1 * jax.random.normal(ks[5], (1, hidden), jnp.float32)
    b2 = 0.1 * jax.random.normal(ks[6], (1, hidden), jnp.float32)
    w3 = scale * jax.random.normal(ks[7], (hidden, hidden), jnp.float32)
    b3 = 0.01 * jax.random.normal(ks[8], (1, hidden), jnp.float32)
    return (wemb, bemb, w1, g1, b1, w2, g2, b2, w3, b3)


def _reference(x, params, weight_dtype=jnp.bfloat16, z_dtype=jnp.float32):
    """Pure-JAX reference.  weight_dtype mirrors the MXU input cast, z_dtype mirrors the
    inter-stage activation storage precision of the tiled kernel path."""
    wemb, bemb, w1, g1, b1, w2, g2, b2, w3, b3 = params
    xf = x.reshape(x.shape[0], -1)

    def mm(a, w):
        return jnp.dot(a.astype(weight_dtype), w.astype(weight_dtype),
                       preferred_element_type=jnp.float32)

    def rnd(z):
        return z.astype(z_dtype).astype(jnp.float32)

    def bn_relu(z, g, b):
        mu = z.mean(0, keepdims=True)
        var = ((z - mu) ** 2).mean(0, keepdims=True)   # biased variance (BN training mode)
        return jnp.maximum((z - mu) * jax.lax.rsqrt(var + EPS) * g + b, 0.0)

    h = mm(xf, wemb) + bemb
    z = bn_relu(rnd(mm(h, w1)), g1, b1)
    z = bn_relu(rnd(mm(z, w2)), g2, b2)
    return mm(z, w3) + b3


if __name__ == "__main__":
    key = jax.random.PRNGKey(0)
    kx, kp = jax.random.split(key)

    # Small but tiling-exercising shapes: batch=64, channels=4, length=64 -> features=256;
    # context_dim=128 (lane-dense), hidden = output = 512.
    B, C, L = 64, 4, 64
    context_dim = 128
    H = context_dim * 4

    x = jax.random.normal(kx, (B, C, L), jnp.float32)
    params = init_params(kp, C * L, context_dim, expander_factor=4)

    # One-time weight prep (cast/pad) hoisted out of the per-call path.
    prep = prepare_params(params, max_k_tile=128)

    # 1) tiled / gridded path: 2 batch tiles x 2 K tiles x 2 N tiles; 'parallel' batch axis.
    out_tiled = jax.block_until_ready(
        similarity_embedding(x, prep, max_batch_tile=32, max_n_tile=256))
    assert out_tiled.shape == (B, H), out_tiled.shape

    # Tight check vs. a reference that mirrors the kernel's precision (bf16 MXU inputs,
    # bf16 inter-stage activation storage).
    ref_bf16z = _reference(x, params, z_dtype=jnp.bfloat16)
    assert jnp.allclose(out_tiled, ref_bf16z, atol=5e-3, rtol=5e-3), \
        float(jnp.max(jnp.abs(out_tiled - ref_bf16z)))

    # Looser checks vs. f32-intermediate and full-f32 references.
    ref_f32z = _reference(x, params)
    assert jnp.allclose(out_tiled, ref_f32z, atol=5e-2, rtol=5e-2), \
        float(jnp.max(jnp.abs(out_tiled - ref_f32z)))
    ref32 = _reference(x, params, weight_dtype=jnp.float32)
    assert jnp.allclose(out_tiled, ref32, atol=1e-1, rtol=1e-1), \
        float(jnp.max(jnp.abs(out_tiled - ref32)))

    # 2) small-batch fused single-launch fast path (covers multiple K slabs now).
    xs = x[:8]
    out_fused = jax.block_until_ready(similarity_embedding(xs, prep))
    assert out_fused.shape == (8, H), out_fused.shape
    ref_s = _reference(xs, params)
    assert jnp.allclose(out_fused, ref_s, atol=5e-3, rtol=5e-3), \
        float(jnp.max(jnp.abs(out_fused - ref_s)))

    print("KERNEL_OK")
</pallas_src>

<mosaic_0001>
module attributes {stable_mosaic.version = 11 : i64} {
  func.func @_embed_linear1_kernel(%arg0: i32, %arg1: i32, %arg2: memref<32x128xf32, #tpu.memory_space<vmem>>, %arg3: memref<128x128xbf16, #tpu.memory_space<vmem>>, %arg4: memref<1x128xf32, #tpu.memory_space<vmem>>, %arg5: memref<128x512xbf16, #tpu.memory_space<vmem>>, %arg6: memref<32x512xbf16, #tpu.memory_space<vmem>>, %arg7: memref<1x1x512xf32, #tpu.memory_space<vmem>>, %arg8: memref<1x1x512xf32, #tpu.memory_space<vmem>>, %arg9: memref<32x128xf32, #tpu.memory_space<vmem>>) attributes {dimension_semantics = [#tpu.dimension_semantics<parallel>, #tpu.dimension_semantics<arbitrary>], iteration_bounds = array<i64: 2, 2>, scalar_prefetch = 0 : i64, scratch_operands = 1 : i64, tpu.core_type = #tpu.core_type<tc>, window_params = [{transform_indices = @transform_0, window_bounds = array<i64: 32, 128>}, {transform_indices = @transform_1, window_bounds = array<i64: 128, 128>}, {pipeline_mode = #tpu.pipeline_mode<synchronous>, transform_indices = @transform_2, window_bounds = array<i64: 1, 128>}, {pipeline_mode = #tpu.pipeline_mode<synchronous>, transform_indices = @transform_3, window_bounds = array<i64: 128, 512>}, {transform_indices = @transform_4, window_bounds = array<i64: 32, 512>}, {transform_indices = @transform_5, window_bounds = array<i64: 1, 1, 512>}, {transform_indices = @transform_6, window_bounds = array<i64: 1, 1, 512>}]} {
    %c0_i32 = arith.constant 0 : i32
    %0 = arith.cmpi eq, %arg1, %c0_i32 : i32
    %1 = arith.extui %0 : i1 to i32
    %c0_i32_0 = arith.constant 0 : i32
    %2 = arith.cmpi ne, %1, %c0_i32_0 : i32
    scf.if %2 {
      %cst_9 = arith.constant 0.000000e+00 : f32
      %13 = vector.broadcast %cst_9 : f32 to vector<32x128xf32>
      %c0_10 = arith.constant 0 : index
      %c0_11 = arith.constant 0 : index
      %14 = vector.load %arg9[%c0_10, %c0_11] : memref<32x128xf32, #tpu.memory_space<vmem>>, vector<32x128xf32>
      tpu.vector_store %arg9[%c0_10, %c0_11], %13 {strides = array<i32>} : memref<32x128xf32, #tpu.memory_space<vmem>>, vector<32x128xf32>,
    } else {
    }
    %c0 = arith.constant 0 : index
    %c0_1 = arith.constant 0 : index
    %3 = vector.load %arg9[%c0, %c0_1] : memref<32x128xf32, #tpu.memory_space<vmem>>, vector<32x128xf32>
    %c0_2 = arith.constant 0 : index
    %c0_3 = arith.constant 0 : index
    %4 = vector.load %arg2[%c0_2, %c0_3] : memref<32x128xf32, #tpu.memory_space<vmem>>, vector<32x128xf32>
    %5 = arith.truncf %4 : vector<32x128xf32> to vector<32x128xbf16>
    %c0_4 = arith.constant 0 : index
    %c0_5 = arith.constant 0 : index
    %6 = vector.load %arg3[%c0_4, %c0_5] : memref<128x128xbf16, #tpu.memory_space<vmem>>, vector<128x128xbf16>
    %cst = arith.constant dense<0.000000e+00> : vector<32x128xf32>
    %7 = tpu.matmul %5, %6, %cst {dimension_numbers = #tpu.dot_dimension_numbers<[1], [0], [0], [1], [0, 0, 1, 1], [], []>} : vector<32x128xbf16>, vector<128x128xbf16>, vector<32x128xf32> -> vector<32x128xf32>
    %8 = arith.addf %3, %7 : vector<32x128xf32>
    %c0_6 = arith.constant 0 : index
    %c0_7 = arith.constant 0 : index
    %9 = vector.load %arg9[%c0_6, %c0_7] : memref<32x128xf32, #tpu.memory_space<vmem>>, vector<32x128xf32>
    tpu.vector_store %arg9[%c0_6, %c0_7], %8 {strides = array<i32>} : memref<32x128xf32, #tpu.memory_space<vmem>>, vector<32x128xf32>,
    %c1_i32 = arith.constant 1 : i32
    %10 = arith.cmpi eq, %arg1, %c1_i32 : i32
    %11 = arith.extui %10 : i1 to i32
    %c0_i32_8 = arith.constant 0 : i32
    %12 = arith.cmpi ne, %11, %c0_i32_8 : i32
    scf.if %12 {
      %c0_9 = arith.constant 0 : index
      %c0_10 = arith.constant 0 : index
      %13 = vector.load %arg9[%c0_9, %c0_10] : memref<32x128xf32, #tpu.memory_space<vmem>>, vector<32x128xf32>
      %c0_11 = arith.constant 0 : index
      %c0_12 = arith.constant 0 : index
      %14 = vector.load %arg4[%c0_11, %c0_12] : memref<1x128xf32, #tpu.memory_space<vmem>>, vector<1x128xf32>
      %15 = vector.broadcast %14 : vector<1x128xf32> to vector<32x128xf32>
      %16 = arith.addf %13, %15 : vector<32x128xf32>
      %17 = arith.truncf %16 : vector<32x128xf32> to vector<32x128xbf16>
      %c0_13 = arith.constant 0 : index
      %c0_14 = arith.constant 0 : index
      %18 = vector.load %arg5[%c0_13, %c0_14] : memref<128x512xbf16, #tpu.memory_space<vmem>>, vector<128x512xbf16>
      %cst_15 = arith.constant dense<0.000000e+00> : vector<32x512xf32>
      %19 = tpu.matmul %17, %18, %cst_15 {dimension_numbers = #tpu.dot_dimension_numbers<[1], [0], [0], [1], [0, 0, 1, 1], [], []>} : vector<32x128xbf16>, vector<128x512xbf16>, vector<32x512xf32> -> vector<32x512xf32>
      %20 = arith.truncf %19 : vector<32x512xf32> to vector<32x512xbf16>
      %c0_16 = arith.constant 0 : index
      %c0_17 = arith.constant 0 : index
      %21 = vector.load %arg6[%c0_16, %c0_17] : memref<32x512xbf16, #tpu.memory_space<vmem>>, vector<32x512xbf16>
      tpu.vector_store %arg6[%c0_16, %c0_17], %20 {strides = array<i32>} : memref<32x512xbf16, #tpu.memory_space<vmem>>, vector<32x512xbf16>,
      %22 = arith.extf %20 : vector<32x512xbf16> to vector<32x512xf32>
      %c32_i32 = arith.constant 32 : i32
      %23 = arith.muli %arg0, %c32_i32 : i32
      %24 = tpu.iota {dimensions = array<i32: 0>} : vector<32x1xi32>
      %25 = vector.broadcast %23 : i32 to vector<32x1xi32>
      %26 = arith.addi %24, %25 : vector<32x1xi32>
      %c64_i32 = arith.constant 64 : i32
      %27 = vector.broadcast %c64_i32 : i32 to vector<32x1xi32>
      %28 = arith.cmpi slt, %26, %27 : vector<32x1xi32>
      %29 = arith.extui %28 : vector<32x1xi1> to vector<32x1xi32>
      %30 = arith.sitofp %29 : vector<32x1xi32> to vector<32x1xf32>
      %31 = vector.broadcast %30 : vector<32x1xf32> to vector<32x512xf32>
      %32 = arith.mulf %22, %31 : vector<32x512xf32>
      %cst_18 = arith.constant dense<0.000000e+00> : vector<512xf32>
      %33 = vector.multi_reduction <add>, %32, %cst_18 [0] : vector<32x512xf32> to vector<512xf32>
      %34 = vector.shape_cast %33 : vector<512xf32> to vector<1x512xf32>
      %35 = vector.shape_cast %34 : vector<1x512xf32> to vector<1x1x512xf32>
      %c0_19 = arith.constant 0 : index
      %c0_20 = arith.constant 0 : index
      %c0_21 = arith.constant 0 : index
      %36 = vector.load %arg7[%c0_19, %c0_20, %c0_21] : memref<1x1x512xf32, #tpu.memory_space<vmem>>, vector<1x1x512xf32>
      tpu.vector_store %arg7[%c0_19, %c0_20, %c0_21], %35 {strides = array<i32>} : memref<1x1x512xf32, #tpu.memory_space<vmem>>, vector<1x1x512xf32>,
      %37 = arith.mulf %22, %22 : vector<32x512xf32>
      %38 = vector.broadcast %30 : vector<32x1xf32> to vector<32x512xf32>
      %39 = arith.mulf %37, %38 : vector<32x512xf32>
      %cst_22 = arith.constant dense<0.000000e+00> : vector<512xf32>
      %40 = vector.multi_reduction <add>, %39, %cst_22 [0] : vector<32x512xf32> to vector<512xf32>
      %41 = vector.shape_cast %40 : vector<512xf32> to vector<1x512xf32>
      %42 = vector.shape_cast %41 : vector<1x512xf32> to vector<1x1x512xf32>
      %c0_23 = arith.constant 0 : index
      %c0_24 = arith.constant 0 : index
      %c0_25 = arith.constant 0 : index
      %43 = vector.load %arg8[%c0_23, %c0_24, %c0_25] : memref<1x1x512xf32, #tpu.memory_space<vmem>>, vector<1x1x512xf32>
      tpu.vector_store %arg8[%c0_23, %c0_24, %c0_25], %42 {strides = array<i32>} : memref<1x1x512xf32, #tpu.memory_space<vmem>>, vector<1x1x512xf32>,
    } else {
    }
    return
  }
  func.func @transform_0(%arg0: i32, %arg1: i32) -> (i32, i32) {
    %c0_i32 = arith.constant 0 : i32
    return %arg0, %arg1 : i32, i32
  }
  func.func @transform_1(%arg0: i32, %arg1: i32) -> (i32, i32) {
    %c0_i32 = arith.constant 0 : i32
    %c0_i32_0 = arith.constant 0 : i32
    return %arg1, %c0_i32 : i32, i32
  }
  func.func @transform_2(%arg0: i32, %arg1: i32) -> (i32, i32) {
    %c0_i32 = arith.constant 0 : i32
    %c0_i32_0 = arith.constant 0 : i32
    %c0_i32_1 = arith.constant 0 : i32
    return %c0_i32, %c0_i32_0 : i32, i32
  }
  func.func @transform_3(%arg0: i32, %arg1: i32) -> (i32, i32) {
    %c0_i32 = arith.constant 0 : i32
    %c0_i32_0 = arith.constant 0 : i32
    %c0_i32_1 = arith.constant 0 : i32
    return %c0_i32, %c0_i32_0 : i32, i32
  }
  func.func @transform_4(%arg0: i32, %arg1: i32) -> (i32, i32) {
    %c0_i32 = arith.constant 0 : i32
    %c0_i32_0 = arith.constant 0 : i32
    return %arg0, %c0_i32 : i32, i32
  }
  func.func @transform_5(%arg0: i32, %arg1: i32) -> (i32, i32, i32) {
    %c0_i32 = arith.constant 0 : i32
    %c0_i32_0 = arith.constant 0 : i32
    %c0_i32_1 = arith.constant 0 : i32
    return %arg0, %c0_i32, %c0_i32_0 : i32, i32, i32
  }
  func.func @transform_6(%arg0: i32, %arg1: i32) -> (i32, i32, i32) {
    %c0_i32 = arith.constant 0 : i32
    %c0_i32_0 = arith.constant 0 : i32
    %c0_i32_1 = arith.constant 0 : i32
    return %arg0, %c0_i32, %c0_i32_0 : i32, i32, i32
  }
}

</mosaic_0001>

<llo_original>
// kernel: tpu_custom_call.1
$region0: #{tpu_custom_call.1}
  #allocation0 [shape = 'u32[]', space=smem, size = 0x4, offset = 0x4, fixed_abs, tag = 'smem constant byte address 0x4 - core index']
  #allocation1 [shape = 'u32[144,128]{1,0:T(1,128)}', space=vmem, size = 0x12000, scoped, tag = 'internal scratch']
  #allocation2 [shape = 'f32[32,128]{1,0:T(8,128)}', space=vmem, size = 0x4000, scoped, tag = 'scratch operand']
  %s0 = inlined_call_operand.hbm [shape: f32[64,256], index: 0, kind: input, shape index: {}]
  %s1 = inlined_call_operand.hbm [shape: bf16[256,128], index: 1, kind: input, shape index: {}]
  %s2 = inlined_call_operand.vmem [shape: f32[1,128], index: 2, kind: input, shape index: {}]
  %s3 = inlined_call_operand.hbm [shape: bf16[128,512], index: 3, kind: input, shape index: {}]
  %s4 = inlined_call_operand.hbm [shape: bf16[64,512], index: 4, kind: output, shape index: {0}]
  %s5 = inlined_call_operand.hbm [shape: f32[2,1,512], index: 5, kind: output, shape index: {1}]
  %s6 = inlined_call_operand.hbm [shape: f32[2,1,512], index: 6, kind: output, shape index: {2}]
  %7 = xla_tuple %s4, %s5, %s6
  %s8 = sld [smem:[#allocation0]]
  $region85: #{tpu_custom_call.1} parent=0
    _
  %s10 = ssub.s32 1, %s8
  %s11 = scalar_select 0, %s10, %s8
  $region1: #{tpu_custom_call.1} parent=0
    #allocation3 [shape = 'u8[32768]{0}', space=vmem, size = 0x8000, scoped, tag = 'input window, operand 0']
    #allocation4 [shape = 's32[2]{0}', space=sflag, size = 0x8, scoped, tag = 'scoped memory for tpu_custom_call.1']
    #allocation5 [shape = 's32[2]{0}', space=sflag, size = 0x8, scoped, tag = 'scoped memory for tpu_custom_call.1']
    #allocation6 [shape = 'u8[65536]{0}', space=vmem, size = 0x10000, scoped, tag = 'input window, operand 1']
    #allocation7 [shape = 's32[2]{0}', space=sflag, size = 0x8, scoped, tag = 'scoped memory for tpu_custom_call.1']
    #allocation8 [shape = 'u8[131072]{0}', space=vmem, size = 0x20000, scoped, tag = 'input window, operand 3, single buffered']
    #allocation9 [shape = 'u8[65536]{0}', space=vmem, size = 0x10000, scoped, tag = 'output window, operand 0']
    #allocation10 [shape = 'u8[4096]{0}', space=vmem, size = 0x1000, scoped, tag = 'output window, operand 1']
    #allocation11 [shape = 's32[2]{0}', space=sflag, size = 0x8, scoped, tag = 'scoped memory for tpu_custom_call.1']
    #allocation12 [shape = 'u8[4096]{0}', space=vmem, size = 0x1000, scoped, tag = 'output window, operand 2']
    %12 = vsyncpa [#allocation4], 0
    %s13 = scalar_lea.sflag [#allocation4], 1
    %14 = vsyncpa %s13, 0
    %15 = vsyncpa [#allocation7], 0
    %s16 = scalar_lea.sflag [#allocation7], 1
    %17 = vsyncpa %s16, 0
    %18 = vsyncpa [#allocation5], 0
    %s19 = scalar_lea.sflag [#allocation5], 1
    %20 = vsyncpa %s19, 0
    %21 = vsyncpa [#allocation11], 0
    %s22 = scalar_lea.sflag [#allocation11], 1
    %23 = vsyncpa %s22, 0
    loop: start=0, step=1, limit=6
    $region2: #{tpu_custom_call.1} parent=1 // loop_pre_header
      _
    $region3: #{tpu_custom_call.1} parent=1 // loop_header
      %s25 = sphi 0, %s29
      %p26 = scmp.ge.s32.totalorder %s25, 6
      %s32 = sphi 0, %s44
      %s33 = sphi 0, %s40
      %s34 = sphi 0, %s32
      %s35 = sphi 0, %s33
      %s36 = sphi 0, %s34
      %s37 = sphi 0, %s35
      %s49 = sphi 0, %s51
      %s52 = sphi 0, %s49
      %s53 = sphi 0, %s52
      %s69 = sphi 0, %s53
      %s75 = sphi 0, %s77
      %s78 = sphi 0, %s75
      %s79 = sphi 0, %s78
      %s95 = sphi 0, %s79
      %s99 = sphi 0, %s99
      %s101 = sphi 0, %s99
      %s102 = sphi 0, %s101
      %s116 = sphi 0, %s102
      %s120 = sphi 0, %s120
      %s122 = sphi 0, %s120
      %s123 = sphi 0, %s122
      %s137 = sphi 0, %s123
      %s143 = sphi 0, %s145
      %s146 = sphi 0, %s143
      %s147 = sphi 0, %s146
      %s163 = sphi 0, %s147
      %s169 = sphi 0, %s171
      %s172 = sphi 0, %s169
      %s173 = sphi 0, %s172
      %s189 = sphi 0, %s173
      %s195 = sphi 0, %s197
      %s198 = sphi 0, %s195
      %s199 = sphi 0, %s198
      %s215 = sphi 0, %s199
    $region4: #{tpu_custom_call.1} parent=1 // loop_header_branch
      %28 = sbr.rel (%p26) target = $region8
    $region5: #{tpu_custom_call.1} parent=1 // loop_body
      %s30 = ssub.s32 %s25, 1
      %s31 = ssub.s32 %s25, 2
      %s38 = sadd.s32 1, %s33
      %p39 = scmp.ge.s32.totalorder %s38, 2
      %s40 = scalar_select %p39, 0, %s38
      %s41 = sadd.s32 1, %s32
      %s42 = scalar_select %p39, %s41, %s32
      %p43 = scmp.ge.s32.totalorder %s42, 2
      %s44 = scalar_select %p43, 0, %s42
      %s45 = ssub.s32 %s32, %s44
      %s46 = ssub.s32 %s33, %s40
      %s47 = sor.u32 %s45, %s46
      %p48 = scmp.eq.s32.totalorder %s47, 0
      %s50 = sadd.s32 %s49, 1
      %s51 = scalar_select %p48, %s49, %s50
      %p54 = pneg %p48
      %p55 = scmp.eq.s32.totalorder %s25, 3
      %p56 = por %p54, %p55
      %p57 = scmp.ne.s32.totalorder %s49, %s52
      %p58 = scmp.eq.s32.totalorder %s25, 0
      %p59 = por %p57, %p58
      %p60 = scmp.ne.s32.totalorder %s49, %s52
      %p61 = scmp.eq.s32.totalorder %s30, 3
      %p62 = por %p60, %p61
      %p63 = scmp.ne.s32.totalorder %s52, %s53
      %p64 = scmp.eq.s32.totalorder %s30, 0
      %p65 = por %p63, %p64
      %p66 = scmp.ne.s32.totalorder %s52, %s53
      %p67 = scmp.eq.s32.totalorder %s31, 3
      %p68 = por %p66, %p67
      %p70 = scmp.ne.s32.totalorder %s53, %s69
      %p71 = scmp.eq.s32.totalorder %s31, 0
      %p72 = por %p70, %p71
      %s73 = ssub.s32 %s33, %s40
      %p74 = scmp.eq.s32.totalorder %s73, 0
      %s76 = sadd.s32 %s75, 1
      %s77 = scalar_select %p74, %s75, %s76
      %p80 = pneg %p74
      %p81 = scmp.eq.s32.totalorder %s25, 3
      %p82 = por %p80, %p81
      %p83 = scmp.ne.s32.totalorder %s75, %s78
      %p84 = scmp.eq.s32.totalorder %s25, 0
      %p85 = por %p83, %p84
      %p86 = scmp.ne.s32.totalorder %s75, %s78
      %p87 = scmp.eq.s32.totalorder %s30, 3
      %p88 = por %p86, %p87
      %p89 = scmp.ne.s32.totalorder %s78, %s79
      %p90 = scmp.eq.s32.totalorder %s30, 0
      %p91 = por %p89, %p90
      %p92 = scmp.ne.s32.totalorder %s78, %s79
      %p93 = scmp.eq.s32.totalorder %s31, 3
      %p94 = por %p92, %p93
      %p96 = scmp.ne.s32.totalorder %s79, %s95
      %p97 = scmp.eq.s32.totalorder %s31, 0
      %p98 = por %p96, %p97
      %s100 = sadd.s32 %s99, 1
      %p103 = scmp.eq.s32.totalorder %s25, 3
      %p104 = scmp.ne.s32.totalorder %s99, %s101
      %p105 = scmp.eq.s32.totalorder %s25, 0
      %p106 = por %p104, %p105
      %p107 = scmp.ne.s32.totalorder %s99, %s101
      %p108 = scmp.eq.s32.totalorder %s30, 3
      %p109 = por %p107, %p108
      %p110 = scmp.ne.s32.totalorder %s101, %s102
      %p111 = scmp.eq.s32.totalorder %s30, 0
      %p112 = por %p110, %p111
      %p113 = scmp.ne.s32.totalorder %s101, %s102
      %p114 = scmp.eq.s32.totalorder %s31, 3
      %p115 = por %p113, %p114
      %p117 = scmp.ne.s32.totalorder %s102, %s116
      %p118 = scmp.eq.s32.totalorder %s31, 0
      %p119 = por %p117, %p118
      %s121 = sadd.s32 %s120, 1
      %p124 = scmp.eq.s32.totalorder %s25, 3
      %p125 = scmp.ne.s32.totalorder %s120, %s122
      %p126 = scmp.eq.s32.totalorder %s25, 0
      %p127 = por %p125, %p126
      %p128 = scmp.ne.s32.totalorder %s120, %s122
      %p129 = scmp.eq.s32.totalorder %s30, 3
      %p130 = por %p128, %p129
      %p131 = scmp.ne.s32.totalorder %s122, %s123
      %p132 = scmp.eq.s32.totalorder %s30, 0
      %p133 = por %p131, %p132
      %p134 = scmp.ne.s32.totalorder %s122, %s123
      %p135 = scmp.eq.s32.totalorder %s31, 3
      %p136 = por %p134, %p135
      %p138 = scmp.ne.s32.totalorder %s123, %s137
      %p139 = scmp.eq.s32.totalorder %s31, 0
      %p140 = por %p138, %p139
      %s141 = ssub.s32 %s32, %s44
      %p142 = scmp.eq.s32.totalorder %s141, 0
      %s144 = sadd.s32 %s143, 1
      %s145 = scalar_select %p142, %s143, %s144
      %p148 = pneg %p142
      %p149 = scmp.eq.s32.totalorder %s25, 3
      %p150 = por %p148, %p149
      %p151 = scmp.ne.s32.totalorder %s143, %s146
      %p152 = scmp.eq.s32.totalorder %s25, 0
      %p153 = por %p151, %p152
      %p154 = scmp.ne.s32.totalorder %s143, %s146
      %p155 = scmp.eq.s32.totalorder %s30, 3
      %p156 = por %p154, %p155
      %p157 = scmp.ne.s32.totalorder %s146, %s147
      %p158 = scmp.eq.s32.totalorder %s30, 0
      %p159 = por %p157, %p158
      %p160 = scmp.ne.s32.totalorder %s146, %s147
      %p161 = scmp.eq.s32.totalorder %s31, 3
      %p162 = por %p160, %p161
      %p164 = scmp.ne.s32.totalorder %s147, %s163
      %p165 = scmp.eq.s32.totalorder %s31, 0
      %p166 = por %p164, %p165
      %s167 = ssub.s32 %s32, %s44
      %p168 = scmp.eq.s32.totalorder %s167, 0
      %s170 = sadd.s32 %s169, 1
      %s171 = scalar_select %p168, %s169, %s170
      %p174 = pneg %p168
      %p175 = scmp.eq.s32.totalorder %s25, 3
      %p176 = por %p174, %p175
      %p177 = scmp.ne.s32.totalorder %s169, %s172
      %p178 = scmp.eq.s32.totalorder %s25, 0
      %p179 = por %p177, %p178
      %p180 = scmp.ne.s32.totalorder %s169, %s172
      %p181 = scmp.eq.s32.totalorder %s30, 3
      %p182 = por %p180, %p181
      %p183 = scmp.ne.s32.totalorder %s172, %s173
      %p184 = scmp.eq.s32.totalorder %s30, 0
      %p185 = por %p183, %p184
      %p186 = scmp.ne.s32.totalorder %s172, %s173
      %p187 = scmp.eq.s32.totalorder %s31, 3
      %p188 = por %p186, %p187
      %p190 = scmp.ne.s32.totalorder %s173, %s189
      %p191 = scmp.eq.s32.totalorder %s31, 0
      %p192 = por %p190, %p191
      %s193 = ssub.s32 %s32, %s44
      %p194 = scmp.eq.s32.totalorder %s193, 0
      %s196 = sadd.s32 %s195, 1
      %s197 = scalar_select %p194, %s195, %s196
      %p200 = pneg %p194
      %p201 = scmp.eq.s32.totalorder %s25, 3
      %p202 = por %p200, %p201
      %p203 = scmp.ne.s32.totalorder %s195, %s198
      %p204 = scmp.eq.s32.totalorder %s25, 0
      %p205 = por %p203, %p204
      %p206 = scmp.ne.s32.totalorder %s195, %s198
      %p207 = scmp.eq.s32.totalorder %s30, 3
      %p208 = por %p206, %p207
      %p209 = scmp.ne.s32.totalorder %s198, %s199
      %p210 = scmp.eq.s32.totalorder %s30, 0
      %p211 = por %p209, %p210
      %p212 = scmp.ne.s32.totalorder %s198, %s199
      %p213 = scmp.eq.s32.totalorder %s31, 3
      %p214 = por %p212, %p213
      %p216 = scmp.ne.s32.totalorder %s199, %s215
      %p217 = scmp.eq.s32.totalorder %s31, 0
      %p218 = por %p216, %p217
      %p219 = scmp.le.s32.totalorder 1, %s25
      %p220 = scmp.lt.s32.totalorder %s25, 5
      %p221 = pnand %p219, %p220
      %p222 = pneg %p221
      // Predicated region
      $region9: #{tpu_custom_call.1} parent=5 // pred_check
        _
      $region10: #{tpu_custom_call.1} parent=5 // pred_check_branch
        %224 = sbr.rel (%p221) target = $region12
      $region11: #{tpu_custom_call.1} parent=5 // pred_region
        %s225 = ssub.s32 %s25, 1
        // Predicated region
        $region13: #{tpu_custom_call.1} parent=11 // pred_check
          %p226 = pneg %p112
        $region14: #{tpu_custom_call.1} parent=11 // pred_check_branch
          %228 = sbr.rel (%p226) target = $region16
        $region15: #{tpu_custom_call.1} parent=11 // pred_region
          _
        $region16: #{tpu_custom_call.1} parent=11 // pred_fallthru
          _
        // Predicated region
        $region17: #{tpu_custom_call.1} parent=11 // pred_check
          %p229 = pneg %p133
        $region18: #{tpu_custom_call.1} parent=11 // pred_check_branch
          %231 = sbr.rel (%p229) target = $region20
        $region19: #{tpu_custom_call.1} parent=11 // pred_region
          %s233 = ssub.s32 4096, 4096
          %234 = vsyncadd [#allocation7], %s233
          %s235 = sshll.u32 [#allocation8], 4
          %s236 = int_to_ptr.vmem [resolvable:$true] %s235
          %241 = dma.hbm_to_vmem [thread:$0]  %s3, 4096, %s236, [#allocation7], 256, 256, 16
        $region20: #{tpu_custom_call.1} parent=11 // pred_fallthru
          _
      $region12: #{tpu_custom_call.1} parent=5 // pred_fallthru
        _
      %p242 = scmp.lt.s32.totalorder %s25, 4
      // Predicated region
      $region21: #{tpu_custom_call.1} parent=5 // pred_check
        %p243 = pneg %p242
      $region22: #{tpu_custom_call.1} parent=5 // pred_check_branch
        %245 = sbr.rel (%p243) target = $region24
      $region23: #{tpu_custom_call.1} parent=5 // pred_region
        // Predicated region
        $region25: #{tpu_custom_call.1} parent=23 // pred_check
          %p246 = pneg %p59
        $region26: #{tpu_custom_call.1} parent=23 // pred_check_branch
          %248 = sbr.rel (%p246) target = $region28
        $region27: #{tpu_custom_call.1} parent=23 // pred_region
          %s249 = sand.u32 %s49, 1
          %s250 = scalar_lea.sflag [#allocation4], %s249
          %s251 = sand.u32 %s49, 1
          %s252 = smul.addr %s251, 32
          %s253 = scalar_lea.vmem [#allocation3], %s252
          %s254 = smul.u32 4, %s32
          %s256 = ssub.s32 512, 512
          %257 = vsyncadd %s250, %s256
          %s258 = smul.addr %s254, 2
          %s259 = sadd.s32 %s33, %s258
          %s260 = smul.addr %s259, 128
          %s261 = scalar_lea.hbm %s0, %s260
          %s262 = sshll.u32 %s253, 4
          %s263 = int_to_ptr.vmem [resolvable:$true] %s262
          %268 = dma.hbm_to_vmem [thread:$0]  %s261, 512, %s263, %s250, 256, 128, 8
        $region28: #{tpu_custom_call.1} parent=23 // pred_fallthru
          _
        // Predicated region
        $region29: #{tpu_custom_call.1} parent=23 // pred_check
          %p269 = pneg %p85
        $region30: #{tpu_custom_call.1} parent=23 // pred_check_branch
          %271 = sbr.rel (%p269) target = $region32
        $region31: #{tpu_custom_call.1} parent=23 // pred_region
          %s272 = sand.u32 %s25, 1
          %s273 = scalar_lea.sflag [#allocation7], %s272
          %s274 = sand.u32 %s75, 1
          %s275 = smul.addr %s274, 64
          %s276 = scalar_lea.vmem [#allocation6], %s275
          %s277 = smul.u32 16, %s33
          %s279 = ssub.s32 1024, 1024
          %280 = vsyncadd %s273, %s279
          %s281 = smul.addr %s277, 64
          %s282 = scalar_lea.hbm %s1, %s281
          %s283 = sshll.u32 %s276, 4
          %s284 = int_to_ptr.vmem [resolvable:$true] %s283
          %289 = dma.hbm_to_vmem [thread:$0]  %s282, 1024, %s284, %s273, 64, 64, 4
        $region32: #{tpu_custom_call.1} parent=23 // pred_fallthru
          _
      $region24: #{tpu_custom_call.1} parent=5 // pred_fallthru
        _
      %p290 = scmp.le.s32.totalorder 1, %s25
      %p291 = scmp.lt.s32.totalorder %s25, 5
      %p292 = pnand %p290, %p291
      %p293 = pneg %p292
      // Predicated region
      $region33: #{tpu_custom_call.1} parent=5 // pred_check
        _
      $region34: #{tpu_custom_call.1} parent=5 // pred_check_branch
        %295 = sbr.rel (%p292) target = $region36
      $region35: #{tpu_custom_call.1} parent=5 // pred_region
        %s296 = ssub.s32 %s25, 1
        %s297 = sand.u32 %s52, 1
        %s298 = scalar_lea.sflag [#allocation4], %s297
        %s299 = sand.u32 %s52, 1
        %s300 = smul.addr %s299, 32
        %s301 = scalar_lea.vmem [#allocation3], %s300
        // Predicated region
        $region37: #{tpu_custom_call.1} parent=35 // pred_check
          %p302 = pneg %p65
        $region38: #{tpu_custom_call.1} parent=35 // pred_check_branch
          %304 = sbr.rel (%p302) target = $region40
        $region39: #{tpu_custom_call.1} parent=35 // pred_region
          %305 = dma.done %s298, 512
        $region40: #{tpu_custom_call.1} parent=35 // pred_fallthru
          _
        %s306 = sand.u32 %s30, 1
        %s307 = scalar_lea.sflag [#allocation7], %s306
        %s308 = sand.u32 %s78, 1
        %s309 = smul.addr %s308, 64
        %s310 = scalar_lea.vmem [#allocation6], %s309
        // Predicated region
        $region41: #{tpu_custom_call.1} parent=35 // pred_check
          %p311 = pneg %p91
        $region42: #{tpu_custom_call.1} parent=35 // pred_check_branch
          %313 = sbr.rel (%p311) target = $region44
        $region43: #{tpu_custom_call.1} parent=35 // pred_region
          %314 = dma.done %s307, 1024
        $region44: #{tpu_custom_call.1} parent=35 // pred_fallthru
          _
        // Predicated region
        $region45: #{tpu_custom_call.1} parent=35 // pred_check
          %p315 = pneg %p133
        $region46: #{tpu_custom_call.1} parent=35 // pred_check_branch
          %317 = sbr.rel (%p315) target = $region48
        $region47: #{tpu_custom_call.1} parent=35 // pred_region
          %318 = dma.done [#allocation7], 4096
        $region48: #{tpu_custom_call.1} parent=35 // pred_fallthru
          _
        %s319 = sand.u32 %s52, 1
        %s320 = scalar_lea.sflag [#allocation4], %s319
        %s321 = sand.u32 %s52, 1
        %s322 = smul.addr %s321, 32
        %s323 = scalar_lea.vmem [#allocation3], %s322
        %p324 = pneg %p65
        %p325 = pneg %p62
        %s326 = sand.u32 %s30, 1
        %s327 = scalar_lea.sflag [#allocation7], %s326
        %s328 = sand.u32 %s78, 1
        %s329 = smul.addr %s328, 64
        %s330 = scalar_lea.vmem [#allocation6], %s329
        %p331 = pneg %p91
        %p332 = pneg %p88
        %p333 = pneg %p112
        %p334 = pneg %p109
        %p335 = pneg %p133
        %p336 = pneg %p130
        %p337 = pneg %p159
        %p338 = pneg %p156
        %s339 = sand.u32 %s146, 1
        %s340 = scalar_lea.sflag [#allocation5], %s339
        %s341 = sand.u32 %s146, 1
        %s342 = smul.addr %s341, 64
        %s343 = scalar_lea.vmem [#allocation9], %s342
        %p344 = pneg %p185
        %p345 = pneg %p182
        %s346 = sand.u32 %s30, 1
        %s347 = scalar_lea.sflag [#allocation11], %s346
        %s348 = sand.u32 %s172, 1
        %s349 = smul.addr %s348, 4
        %s350 = scalar_lea.vmem [#allocation10], %s349
        %p351 = pneg %p211
        %p352 = pneg %p208
        %s353 = sand.u32 %s30, 1
        %s354 = scalar_lea.sflag [#allocation11], %s353
        %s355 = sand.u32 %s198, 1
        %s356 = smul.addr %s355, 4
        %s357 = scalar_lea.vmem [#allocation12], %s356
        %s358 = smul.u32 4, %s34
        %s359 = smul.u32 16, %s35
        %s360 = smul.u32 4, %s34
        %p362 = scmp.eq.s32.totalorder %s35, 0
        // Predicated region
        $region49: #{tpu_custom_call.1} parent=35 // pred_check
          %p363 = pneg %p362
        $region50: #{tpu_custom_call.1} parent=35 // pred_check_branch
          %365 = sbr.rel (%p363) target = $region52
        $region51: #{tpu_custom_call.1} parent=35 // pred_region
          %366 = vst [vmem:[#allocation2] sm:$0xff] 0.0
          %367 = vst [vmem:[#allocation2 + $0x8] sm:$0xff] 0.0
          %368 = vst [vmem:[#allocation2 + $0x10] sm:$0xff] 0.0
          %369 = vst [vmem:[#allocation2 + $0x18] sm:$0xff] 0.0
        $region52: #{tpu_custom_call.1} parent=35 // pred_fallthru
          _
        %v370 = vld [vmem:[#allocation2] sm:$0xff]
        %v371 = vld [vmem:[#allocation2 + $0x8] sm:$0xff]
        %v372 = vld [vmem:[#allocation2 + $0x10] sm:$0xff]
        %v373 = vld [vmem:[#allocation2 + $0x18] sm:$0xff]
        %v374 = vld [vmem:[%s301] sm:$0xff]
        %v375 = vld [vmem:[%s301 + $0x8] sm:$0xff]
        %v376 = vld [vmem:[%s301 + $0x10] sm:$0xff]
        %v377 = vld [vmem:[%s301 + $0x18] sm:$0xff]
        %v378 = vpack.c.bf16 %v375, %v374
        %v379 = vpack.c.bf16 %v377, %v376
        %v380 = vld [vmem:[%s310] sm:$0xf]
        %v381 = vld [vmem:[%s310 + $0x4] sm:$0xf]
        %v382 = vld [vmem:[%s310 + $0x8] sm:$0xf]
        %v383 = vld [vmem:[%s310 + $0xc] sm:$0xf]
        %v384 = vld [vmem:[%s310 + $0x10] sm:$0xf]
        %v385 = vld [vmem:[%s310 + $0x14] sm:$0xf]
        %v386 = vld [vmem:[%s310 + $0x18] sm:$0xf]
        %v387 = vld [vmem:[%s310 + $0x1c] sm:$0xf]
        %v388 = vld [vmem:[%s310 + $0x20] sm:$0xf]
        %v389 = vld [vmem:[%s310 + $0x24] sm:$0xf]
        %v390 = vld [vmem:[%s310 + $0x28] sm:$0xf]
        %v391 = vld [vmem:[%s310 + $0x2c] sm:$0xf]
        %v392 = vld [vmem:[%s310 + $0x30] sm:$0xf]
        %v393 = vld [vmem:[%s310 + $0x34] sm:$0xf]
        %v394 = vld [vmem:[%s310 + $0x38] sm:$0xf]
        %v395 = vld [vmem:[%s310 + $0x3c] sm:$0xf]
        %v412 = vunpack.c.l.b16 %v380
        %v413 = vunpack.c.l.b16 %v381
        %v414 = vunpack.c.l.b16 %v382
        %v415 = vunpack.c.l.b16 %v383
        %v416 = vunpack.c.l.b16 %v384
        %v417 = vunpack.c.l.b16 %v385
        %v418 = vunpack.c.l.b16 %v386
        %v419 = vunpack.c.l.b16 %v387
        %v420 = vunpack.c.l.b16 %v388
        %v421 = vunpack.c.l.b16 %v389
        %v422 = vunpack.c.l.b16 %v390
        %v423 = vunpack.c.l.b16 %v391
        %v424 = vunpack.c.l.b16 %v392
        %v425 = vunpack.c.l.b16 %v393
        %v426 = vunpack.c.l.b16 %v394
        %v427 = vunpack.c.l.b16 %v395
        %v428 = vpack.c.b16 %v413, %v412
        %v429 = vpack.c.b16 %v415, %v414
        %v430 = vpack.c.b16 %v417, %v416
        %v431 = vpack.c.b16 %v419, %v418
        %v432 = vpack.c.b16 %v421, %v420
        %v433 = vpack.c.b16 %v423, %v422
        %v434 = vpack.c.b16 %v425, %v424
        %v435 = vpack.c.b16 %v427, %v426
        %444 = vmatprep.subr.bf16.mxu0 0
        %445 = vmatpush1.bf16.msra.mxu0 %v428
        %446 = vmatprep.subr.bf16.mxu0 0
        %447 = vmatpush1.bf16.msra.mxu0 %v429
        %448 = vmatprep.subr.bf16.mxu0 0
        %449 = vmatpush1.bf16.msra.mxu0 %v430
        %450 = vmatprep.subr.bf16.mxu0 0
        %451 = vmatpush1.bf16.msra.mxu0 %v431
        %452 = vmatprep.subr.bf16.mxu0 0
        %453 = vmatpush1.bf16.msra.mxu0 %v432
        %454 = vmatprep.subr.bf16.mxu0 0
        %455 = vmatpush1.bf16.msra.mxu0 %v433
        %456 = vmatprep.subr.bf16.mxu0 0
        %457 = vmatpush1.bf16.msra.mxu0 %v434
        %458 = vmatprep.subr.bf16.mxu0 0
        %459 = vmatpush1.bf16.msra.mxu0 %v435
        %460 = vmatprep.subr.bf16.mxu0 0
        %461 = vmatpush1.bf16.msra.mxu0 0
        %462 = vmatprep.subr.bf16.mxu0 0
        %463 = vmatpush1.bf16.msra.mxu0 0
        %464 = vmatprep.subr.bf16.mxu0 0
        %465 = vmatpush1.bf16.msra.mxu0 0
        %466 = vmatprep.subr.bf16.mxu0 0
        %467 = vmatpush1.bf16.msra.mxu0 0
        %468 = vmatprep.subr.bf16.mxu0 0
        %469 = vmatpush1.bf16.msra.mxu0 0
        %470 = vmatprep.subr.bf16.mxu0 0
        %471 = vmatpush1.bf16.msra.mxu0 0
        %472 = vmatprep.subr.bf16.mxu0 0
        %473 = vmatpush1.bf16.msra.mxu0 0
        %474 = vmatprep.subr.bf16.mxu0 0
        %475 = vmatpush1.bf16.msra.mxu0 0
        %476 = vmatprep.mubr.bf16.mxu0 0
        %477 = vmatmul.mubr.bf16.gmra.mrb[0].mxu0 %v378
        %v478 = vpop.f32.mrb[0].mxu0
        %v479 = vadd.f32 0.0, %v478
        %v480 = vpop.f32.mrb[0].mxu0
        %v481 = vpop.f32.mrb[0].mxu0
        %v482 = vadd.f32 0.0, %v481
        %v483 = vpop.f32.mrb[0].mxu0
        %484 = vmatprep.mubr.bf16.mxu0 0
        %485 = vmatmul.mubr.bf16.gmra.mrb[0].mxu0 %v379
        %v486 = vpop.f32.mrb[0].mxu0
        %v487 = vadd.f32 0.0, %v486
        %v488 = vpop.f32.mrb[0].mxu0
        %v489 = vpop.f32.mrb[0].mxu0
        %v490 = vadd.f32 0.0, %v489
        %v491 = vpop.f32.mrb[0].mxu0
        %492 = vdwg.mxu0
        %v493 = vadd.f32 %v370, %v479
        %v494 = vadd.f32 %v371, %v482
        %v495 = vadd.f32 %v372, %v487
        %v496 = vadd.f32 %v373, %v490
        %497 = vst [vmem:[#allocation2] sm:$0xff] %v493
        %498 = vst [vmem:[#allocation2 + $0x8] sm:$0xff] %v494
        %499 = vst [vmem:[#allocation2 + $0x10] sm:$0xff] %v495
        %500 = vst [vmem:[#allocation2 + $0x18] sm:$0xff] %v496
        %p501 = scmp.eq.s32.totalorder %s35, 1
        // Predicated region
        $region53: #{tpu_custom_call.1} parent=35 // pred_check
          %p502 = pneg %p501
        $region54: #{tpu_custom_call.1} parent=35 // pred_check_branch
          %504 = sbr.rel (%p502) target = $region56
        $region55: #{tpu_custom_call.1} parent=35 // pred_region
          %v505 = vld [vmem:[#allocation2] sm:$0xff]
          %v506 = vld [vmem:[#allocation2 + $0x8] sm:$0xff]
          %v507 = vld [vmem:[#allocation2 + $0x10] sm:$0xff]
          %v508 = vld [vmem:[#allocation2 + $0x18] sm:$0xff]
          %v509 = vld [vmem:[%s2] sm:$0x1]
          %v511 = vlaneseq
          %v512 = vshrl.u32 %v511, 7
          %v513 = vsub.s32 0, %v512
          %v514 = vrot.slane %v509, %v513
          %v516 = vadd.f32 %v505, %v514
          %v517 = vadd.f32 %v506, %v514
          %v518 = vadd.f32 %v507, %v514
          %v519 = vadd.f32 %v508, %v514
          %v520 = vpack.c.bf16 %v517, %v516
          %v521 = vpack.c.bf16 %v519, %v518
          %v522 = vld [vmem:[#allocation8] sm:$0xff]
          %v523 = vld [vmem:[#allocation8 + $0x8] sm:$0xff]
          %v524 = vld [vmem:[#allocation8 + $0x10] sm:$0xff]
          %v525 = vld [vmem:[#allocation8 + $0x18] sm:$0xff]
          %v526 = vld [vmem:[#allocation8 + $0x20] sm:$0xff]
          %v527 = vld [vmem:[#allocation8 + $0x28] sm:$0xff]
          %v528 = vld [vmem:[#allocation8 + $0x30] sm:$0xff]
          %v529 = vld [vmem:[#allocation8 + $0x38] sm:$0xff]
          %v530 = vld [vmem:[#allocation8 + $0x40] sm:$0xff]
          %v531 = vld [vmem:[#allocation8 + $0x48] sm:$0xff]
          %v532 = vld [vmem:[#allocation8 + $0x50] sm:$0xff]
          %v533 = vld [vmem:[#allocation8 + $0x58] sm:$0xff]
          %v534 = vld [vmem:[#allocation8 + $0x60] sm:$0xff]
          %v535 = vld [vmem:[#allocation8 + $0x68] sm:$0xff]
          %v536 = vld [vmem:[#allocation8 + $0x70] sm:$0xff]
          %v537 = vld [vmem:[#allocation8 + $0x78] sm:$0xff]
          %v538 = vld [vmem:[#allocation8 + $0x80] sm:$0xff]
          %v539 = vld [vmem:[#allocation8 + $0x88] sm:$0xff]
          %v540 = vld [vmem:[#allocation8 + $0x90] sm:$0xff]
          %v541 = vld [vmem:[#allocation8 + $0x98] sm:$0xff]
          %v542 = vld [vmem:[#allocation8 + $0xa0] sm:$0xff]
          %v543 = vld [vmem:[#allocation8 + $0xa8] sm:$0xff]
          %v544 = vld [vmem:[#allocation8 + $0xb0] sm:$0xff]
          %v545 = vld [vmem:[#allocation8 + $0xb8] sm:$0xff]
          %v546 = vld [vmem:[#allocation8 + $0xc0] sm:$0xff]
          %v547 = vld [vmem:[#allocation8 + $0xc8] sm:$0xff]
          %v548 = vld [vmem:[#allocation8 + $0xd0] sm:$0xff]
          %v549 = vld [vmem:[#allocation8 + $0xd8] sm:$0xff]
          %v550 = vld [vmem:[#allocation8 + $0xe0] sm:$0xff]
          %v551 = vld [vmem:[#allocation8 + $0xe8] sm:$0xff]
          %v552 = vld [vmem:[#allocation8 + $0xf0] sm:$0xff]
          %v553 = vld [vmem:[#allocation8 + $0xf8] sm:$0xff]
          %v586 = vunpack.c.l.b16 %v522
          %v587 = vunpack.c.h.b16 %v522
          %v588 = vunpack.c.l.b16 %v523
          %v589 = vunpack.c.h.b16 %v523
          %v590 = vunpack.c.l.b16 %v524
          %v591 = vunpack.c.h.b16 %v524
          %v592 = vunpack.c.l.b16 %v525
          %v593 = vunpack.c.h.b16 %v525
          %v594 = vunpack.c.l.b16 %v526
          %v595 = vunpack.c.h.b16 %v526
          %v596 = vunpack.c.l.b16 %v527
          %v597 = vunpack.c.h.b16 %v527
          %v598 = vunpack.c.l.b16 %v528
          %v599 = vunpack.c.h.b16 %v528
          %v600 = vunpack.c.l.b16 %v529
          %v601 = vunpack.c.h.b16 %v529
          %v602 = vunpack.c.l.b16 %v530
          %v603 = vunpack.c.h.b16 %v530
          %v604 = vunpack.c.l.b16 %v531
          %v605 = vunpack.c.h.b16 %v531
          %v606 = vunpack.c.l.b16 %v532
          %v607 = vunpack.c.h.b16 %v532
          %v608 = vunpack.c.l.b16 %v533
          %v609 = vunpack.c.h.b16 %v533
          %v610 = vunpack.c.l.b16 %v534
          %v611 = vunpack.c.h.b16 %v534
          %v612 = vunpack.c.l.b16 %v535
          %v613 = vunpack.c.h.b16 %v535
          %v614 = vunpack.c.l.b16 %v536
          %v615 = vunpack.c.h.b16 %v536
          %v616 = vunpack.c.l.b16 %v537
          %v617 = vunpack.c.h.b16 %v537
          %v618 = vunpack.c.l.b16 %v538
          %v619 = vunpack.c.h.b16 %v538
          %v620 = vunpack.c.l.b16 %v539
          %v621 = vunpack.c.h.b16 %v539
          %v622 = vunpack.c.l.b16 %v540
          %v623 = vunpack.c.h.b16 %v540
          %v624 = vunpack.c.l.b16 %v541
          %v625 = vunpack.c.h.b16 %v541
          %v626 = vunpack.c.l.b16 %v542
          %v627 = vunpack.c.h.b16 %v542
          %v628 = vunpack.c.l.b16 %v543
          %v629 = vunpack.c.h.b16 %v543
          %v630 = vunpack.c.l.b16 %v544
          %v631 = vunpack.c.h.b16 %v544
          %v632 = vunpack.c.l.b16 %v545
          %v633 = vunpack.c.h.b16 %v545
          %v634 = vunpack.c.l.b16 %v546
          %v635 = vunpack.c.h.b16 %v546
          %v636 = vunpack.c.l.b16 %v547
          %v637 = vunpack.c.h.b16 %v547
          %v638 = vunpack.c.l.b16 %v548
          %v639 = vunpack.c.h.b16 %v548
          %v640 = vunpack.c.l.b16 %v549
          %v641 = vunpack.c.h.b16 %v549
          %v642 = vunpack.c.l.b16 %v550
          %v643 = vunpack.c.h.b16 %v550
          %v644 = vunpack.c.l.b16 %v551
          %v645 = vunpack.c.h.b16 %v551
          %v646 = vunpack.c.l.b16 %v552
          %v647 = vunpack.c.h.b16 %v552
          %v648 = vunpack.c.l.b16 %v553
          %v649 = vunpack.c.h.b16 %v553
          %v650 = vpack.c.b16 %v590, %v586
          %v651 = vpack.c.b16 %v591, %v587
          %v652 = vpack.c.b16 %v592, %v588
          %v653 = vpack.c.b16 %v593, %v589
          %v654 = vpack.c.b16 %v598, %v594
          %v655 = vpack.c.b16 %v599, %v595
          %v656 = vpack.c.b16 %v600, %v596
          %v657 = vpack.c.b16 %v601, %v597
          %v658 = vpack.c.b16 %v606, %v602
          %v659 = vpack.c.b16 %v607, %v603
          %v660 = vpack.c.b16 %v608, %v604
          %v661 = vpack.c.b16 %v609, %v605
          %v662 = vpack.c.b16 %v614, %v610
          %v663 = vpack.c.b16 %v615, %v611
          %v664 = vpack.c.b16 %v616, %v612
          %v665 = vpack.c.b16 %v617, %v613
          %v666 = vpack.c.b16 %v622, %v618
          %v667 = vpack.c.b16 %v623, %v619
          %v668 = vpack.c.b16 %v624, %v620
          %v669 = vpack.c.b16 %v625, %v621
          %v670 = vpack.c.b16 %v630, %v626
          %v671 = vpack.c.b16 %v631, %v627
          %v672 = vpack.c.b16 %v632, %v628
          %v673 = vpack.c.b16 %v633, %v629
          %v674 = vpack.c.b16 %v638, %v634
          %v675 = vpack.c.b16 %v639, %v635
          %v676 = vpack.c.b16 %v640, %v636
          %v677 = vpack.c.b16 %v641, %v637
          %v678 = vpack.c.b16 %v646, %v642
          %v679 = vpack.c.b16 %v647, %v643
          %v680 = vpack.c.b16 %v648, %v644
          %v681 = vpack.c.b16 %v649, %v645
          %714 = vmatprep.subr.bf16.mxu0 %v651
          %715 = vmatpush1.bf16.msra.mxu0 %v650
          %716 = vmatprep.subr.bf16.mxu0 %v655
          %717 = vmatpush1.bf16.msra.mxu0 %v654
          %718 = vmatprep.subr.bf16.mxu0 %v659
          %719 = vmatpush1.bf16.msra.mxu0 %v658
          %720 = vmatprep.subr.bf16.mxu0 %v663
          %721 = vmatpush1.bf16.msra.mxu0 %v662
          %722 = vmatprep.subr.bf16.mxu0 %v667
          %723 = vmatpush1.bf16.msra.mxu0 %v666
          %724 = vmatprep.subr.bf16.mxu0 %v671
          %725 = vmatpush1.bf16.msra.mxu0 %v670
          %726 = vmatprep.subr.bf16.mxu0 %v675
          %727 = vmatpush1.bf16.msra.mxu0 %v674
          %728 = vmatprep.subr.bf16.mxu0 %v679
          %729 = vmatpush1.bf16.msra.mxu0 %v678
          %730 = vmatprep.subr.bf16.mxu0 0
          %731 = vmatpush1.bf16.msra.mxu0 0
          %732 = vmatprep.subr.bf16.mxu0 0
          %733 = vmatpush1.bf16.msra.mxu0 0
          %734 = vmatprep.subr.bf16.mxu0 0
          %735 = vmatpush1.bf16.msra.mxu0 0
          %736 = vmatprep.subr.bf16.mxu0 0
          %737 = vmatpush1.bf16.msra.mxu0 0
          %738 = vmatprep.subr.bf16.mxu0 0
          %739 = vmatpush1.bf16.msra.mxu0 0
          %740 = vmatprep.subr.bf16.mxu0 0
          %741 = vmatpush1.bf16.msra.mxu0 0
          %742 = vmatprep.subr.bf16.mxu0 0
          %743 = vmatpush1.bf16.msra.mxu0 0
          %744 = vmatprep.subr.bf16.mxu0 0
          %745 = vmatpush1.bf16.msra.mxu0 0
          %746 = vmatprep.mubr.bf16.mxu0 0
          %747 = vmatmul.mubr.bf16.gmra.mrb[0].mxu0 %v520
          %v748 = vpop.f32.mrb[0].mxu0
          %v749 = vadd.f32 0.0, %v748
          %v750 = vpop.f32.mrb[0].mxu0
          %v751 = vadd.f32 0.0, %v750
          %v752 = vpop.f32.mrb[0].mxu0
          %v753 = vadd.f32 0.0, %v752
          %v754 = vpop.f32.mrb[0].mxu0
          %v755 = vadd.f32 0.0, %v754
          %756 = vmatprep.mubr.bf16.mxu0 0
          %757 = vmatmul.mubr.bf16.gmra.mrb[0].mxu0 %v521
          %v758 = vpop.f32.mrb[0].mxu0
          %v759 = vadd.f32 0.0, %v758
          %v760 = vpop.f32.mrb[0].mxu0
          %v761 = vadd.f32 0.0, %v760
          %v762 = vpop.f32.mrb[0].mxu0
          %v763 = vadd.f32 0.0, %v762
          %v764 = vpop.f32.mrb[0].mxu0
          %v765 = vadd.f32 0.0, %v764
          %766 = vdwg.mxu0
          %767 = vmatprep.subr.bf16.mxu0 %v653
          %768 = vmatpush1.bf16.msra.mxu0 %v652
          %769 = vmatprep.subr.bf16.mxu0 %v657
          %770 = vmatpush1.bf16.msra.mxu0 %v656
          %771 = vmatprep.subr.bf16.mxu0 %v661
          %772 = vmatpush1.bf16.msra.mxu0 %v660
          %773 = vmatprep.subr.bf16.mxu0 %v665
          %774 = vmatpush1.bf16.msra.mxu0 %v664
          %775 = vmatprep.subr.bf16.mxu0 %v669
          %776 = vmatpush1.bf16.msra.mxu0 %v668
          %777 = vmatprep.subr.bf16.mxu0 %v673
          %778 = vmatpush1.bf16.msra.mxu0 %v672
          %779 = vmatprep.subr.bf16.mxu0 %v677
          %780 = vmatpush1.bf16.msra.mxu0 %v676
          %781 = vmatprep.subr.bf16.mxu0 %v681
          %782 = vmatpush1.bf16.msra.mxu0 %v680
          %783 = vmatprep.subr.bf16.mxu0 0
          %784 = vmatpush1.bf16.msra.mxu0 0
          %785 = vmatprep.subr.bf16.mxu0 0
          %786 = vmatpush1.bf16.msra.mxu0 0
          %787 = vmatprep.subr.bf16.mxu0 0
          %788 = vmatpush1.bf16.msra.mxu0 0
          %789 = vmatprep.subr.bf16.mxu0 0
          %790 = vmatpush1.bf16.msra.mxu0 0
          %791 = vmatprep.subr.bf16.mxu0 0
          %792 = vmatpush1.bf16.msra.mxu0 0
          %793 = vmatprep.subr.bf16.mxu0 0
          %794 = vmatpush1.bf16.msra.mxu0 0
          %795 = vmatprep.subr.bf16.mxu0 0
          %796 = vmatpush1.bf16.msra.mxu0 0
          %797 = vmatprep.subr.bf16.mxu0 0
          %798 = vmatpush1.bf16.msra.mxu0 0
          %799 = vmatprep.mubr.bf16.mxu0 0
          %800 = vmatmul.mubr.bf16.gmra.mrb[0].mxu0 %v520
          %v801 = vpop.f32.mrb[0].mxu0
          %v802 = vadd.f32 0.0, %v801
          %v803 = vpop.f32.mrb[0].mxu0
          %v804 = vadd.f32 0.0, %v803
          %v805 = vpop.f32.mrb[0].mxu0
          %v806 = vadd.f32 0.0, %v805
          %v807 = vpop.f32.mrb[0].mxu0
          %v808 = vadd.f32 0.0, %v807
          %809 = vmatprep.mubr.bf16.mxu0 0
          %810 = vmatmul.mubr.bf16.gmra.mrb[0].mxu0 %v521
          %v811 = vpop.f32.mrb[0].mxu0
          %v812 = vadd.f32 0.0, %v811
          %v813 = vpop.f32.mrb[0].mxu0
          %v814 = vadd.f32 0.0, %v813
          %v815 = vpop.f32.mrb[0].mxu0
          %v816 = vadd.f32 0.0, %v815
          %v817 = vpop.f32.mrb[0].mxu0
          %v818 = vadd.f32 0.0, %v817
          %819 = vdwg.mxu0
          %v820 = vpack.c.bf16 %v753, %v749
          %v821 = vpack.c.bf16 %v755, %v751
          %v822 = vpack.c.bf16 %v806, %v802
          %v823 = vpack.c.bf16 %v808, %v804
          %v824 = vpack.c.bf16 %v763, %v759
          %v825 = vpack.c.bf16 %v765, %v761
          %v826 = vpack.c.bf16 %v816, %v812
          %v827 = vpack.c.bf16 %v818, %v814
          %v836 = vunpack.c.l.b16 %v820
          %v837 = vunpack.c.l.b16 %v821
          %v838 = vunpack.c.l.b16 %v822
          %v839 = vunpack.c.l.b16 %v823
          %v840 = vunpack.c.h.b16 %v820
          %v841 = vunpack.c.h.b16 %v821
          %v842 = vunpack.c.h.b16 %v822
          %v843 = vunpack.c.h.b16 %v823
          %v844 = vunpack.c.l.b16 %v824
          %v845 = vunpack.c.l.b16 %v825
          %v846 = vunpack.c.l.b16 %v826
          %v847 = vunpack.c.l.b16 %v827
          %v848 = vunpack.c.h.b16 %v824
          %v849 = vunpack.c.h.b16 %v825
          %v850 = vunpack.c.h.b16 %v826
          %v851 = vunpack.c.h.b16 %v827
          %v852 = vpack.c.b16 %v837, %v836
          %v853 = vpack.c.b16 %v839, %v838
          %v854 = vpack.c.b16 %v841, %v840
          %v855 = vpack.c.b16 %v843, %v842
          %v856 = vpack.c.b16 %v845, %v844
          %v857 = vpack.c.b16 %v847, %v846
          %v858 = vpack.c.b16 %v849, %v848
          %v859 = vpack.c.b16 %v851, %v850
          %868 = vst [vmem:[%s343] sm:$0xff] %v852
          %869 = vst [vmem:[%s343 + $0x8] sm:$0xff] %v853
          %870 = vst [vmem:[%s343 + $0x10] sm:$0xff] %v854
          %871 = vst [vmem:[%s343 + $0x18] sm:$0xff] %v855
          %872 = vst [vmem:[%s343 + $0x20] sm:$0xff] %v856
          %873 = vst [vmem:[%s343 + $0x28] sm:$0xff] %v857
          %874 = vst [vmem:[%s343 + $0x30] sm:$0xff] %v858
          %875 = vst [vmem:[%s343 + $0x38] sm:$0xff] %v859
          %v876 = vunpack.c.l.bf16 %v820
          %v877 = vunpack.c.l.bf16 %v821
          %v878 = vunpack.c.l.bf16 %v822
          %v879 = vunpack.c.l.bf16 %v823
          %v880 = vunpack.c.h.bf16 %v820
          %v881 = vunpack.c.h.bf16 %v821
          %v882 = vunpack.c.h.bf16 %v822
          %v883 = vunpack.c.h.bf16 %v823
          %v884 = vunpack.c.l.bf16 %v824
          %v885 = vunpack.c.l.bf16 %v825
          %v886 = vunpack.c.l.bf16 %v826
          %v887 = vunpack.c.l.bf16 %v827
          %v888 = vunpack.c.h.bf16 %v824
          %v889 = vunpack.c.h.bf16 %v825
          %v890 = vunpack.c.h.bf16 %v826
          %v891 = vunpack.c.h.bf16 %v827
          %s892 = smul.u32 %s34, 32
          %v893 = vlaneseq
          %v894 = vshrl.u32 %v893, 7
          %v895 = vadd.s32 %v894, 8
          %v896 = vadd.s32 %v894, 16
          %v897 = vadd.s32 %v894, 24
          %v898 = vstv %s892
          %v899 = vadd.s32 %v894, %v898
          %v900 = vadd.s32 %v895, %v898
          %v901 = vadd.s32 %v896, %v898
          %v902 = vadd.s32 %v897, %v898
          %vm903 = vcmp.lt.s32.totalorder %v899, 64
          %vm904 = vcmp.lt.s32.totalorder %v900, 64
          %vm905 = vcmp.lt.s32.totalorder %v901, 64
          %vm906 = vcmp.lt.s32.totalorder %v902, 64
          %v907 = vsel %vm903, 1, 0
          %v908 = vsel %vm904, 1, 0
          %v909 = vsel %vm905, 1, 0
          %v910 = vsel %vm906, 1, 0
          %v911 = vcvt.s32.f32 %v907
          %v912 = vcvt.s32.f32 %v908
          %v913 = vcvt.s32.f32 %v909
          %v914 = vcvt.s32.f32 %v910
          %v915 = vmul.f32 %v876, %v911
          %v916 = vmul.f32 %v877, %v911
          %v917 = vmul.f32 %v878, %v911
          %v918 = vmul.f32 %v879, %v911
          %v919 = vmul.f32 %v880, %v912
          %v920 = vmul.f32 %v881, %v912
          %v921 = vmul.f32 %v882, %v912
          %v922 = vmul.f32 %v883, %v912
          %v923 = vmul.f32 %v884, %v913
          %v924 = vmul.f32 %v885, %v913
          %v925 = vmul.f32 %v886, %v913
          %v926 = vmul.f32 %v887, %v913
          %v927 = vmul.f32 %v888, %v914
          %v928 = vmul.f32 %v889, %v914
          %v929 = vmul.f32 %v890, %v914
          %v930 = vmul.f32 %v891, %v914
          %v931 = vadd.f32 %v915, %v919
          %v932 = vadd.f32 %v931, %v923
          %v933 = vadd.f32 %v932, %v927
          %v934 = vrot.slane %v933, 4
          %v935 = vadd.f32 %v933, %v934
          %v936 = vrot.slane %v935, 2
          %v937 = vadd.f32 %v935, %v936
          %v938 = vrot.slane %v937, 1
          %v939 = vadd.f32 %v937, %v938
          %v940 = vadd.f32 %v916, %v920
          %v941 = vadd.f32 %v940, %v924
          %v942 = vadd.f32 %v941, %v928
          %v943 = vrot.slane %v942, 4
          %v944 = vadd.f32 %v942, %v943
          %v945 = vrot.slane %v944, 2
          %v946 = vadd.f32 %v944, %v945
          %v947 = vrot.slane %v946, 1
          %v948 = vadd.f32 %v946, %v947
          %v949 = vadd.f32 %v917, %v921
          %v950 = vadd.f32 %v949, %v925
          %v951 = vadd.f32 %v950, %v929
          %v952 = vrot.slane %v951, 4
          %v953 = vadd.f32 %v951, %v952
          %v954 = vrot.slane %v953, 2
          %v955 = vadd.f32 %v953, %v954
          %v956 = vrot.slane %v955, 1
          %v957 = vadd.f32 %v955, %v956
          %v958 = vadd.f32 %v918, %v922
          %v959 = vadd.f32 %v958, %v926
          %v960 = vadd.f32 %v959, %v930
          %v961 = vrot.slane %v960, 4
          %v962 = vadd.f32 %v960, %v961
          %v963 = vrot.slane %v962, 2
          %v964 = vadd.f32 %v962, %v963
          %v965 = vrot.slane %v964, 1
          %v966 = vadd.f32 %v964, %v965
          %v971 = vcombine.low %v939, %v948
          %v972 = vcombine.low %v957, %v966
          %v974 = vunpack.c.l.s4 1966171168
          %v975 = vunpack.c.0.s8 %v974
          %v976 = vlaneseq
          %v977 = vshrl.u32 %v976, 7
          %v978 = vsub.s32 %v975, %v977
          %v979 = vrot.slane %v971, %v978
          %v981 = vunpack.c.l.s4 1966171168
          %v982 = vunpack.c.0.s8 %v981
          %v983 = vlaneseq
          %v984 = vshrl.u32 %v983, 7
          %v985 = vsub.s32 %v982, %v984
          %v986 = vrot.slane %v972, %v985
          %v987 = vcombine.low %v979, %v986
          %v989 = vunpack.c.l.s4 1966171168
          %v990 = vunpack.c.0.s8 %v989
          %v991 = vlaneseq
          %v992 = vshrl.u32 %v991, 7
          %v993 = vsub.s32 %v990, %v992
          %v994 = vrot.slane %v987, %v993
          %v996 = vlaneseq
          %vm997 = vcmp.ge.s32.totalorder %v996, 0
          %vm998 = vcmp.lt.s32.totalorder %v996, 512
          %vm999 = vmand %vm997, %vm998
          %1000 = vst.msk [vmem:[%s350] sm:$0xf] %vm999, %v994
          %v1001 = vmul.f32 %v876, %v876
          %v1002 = vmul.f32 %v877, %v877
          %v1003 = vmul.f32 %v878, %v878
          %v1004 = vmul.f32 %v879, %v879
          %v1005 = vmul.f32 %v880, %v880
          %v1006 = vmul.f32 %v881, %v881
          %v1007 = vmul.f32 %v882, %v882
          %v1008 = vmul.f32 %v883, %v883
          %v1009 = vmul.f32 %v884, %v884
          %v1010 = vmul.f32 %v885, %v885
          %v1011 = vmul.f32 %v886, %v886
          %v1012 = vmul.f32 %v887, %v887
          %v1013 = vmul.f32 %v888, %v888
          %v1014 = vmul.f32 %v889, %v889
          %v1015 = vmul.f32 %v890, %v890
          %v1016 = vmul.f32 %v891, %v891
          %v1017 = vmul.f32 %v1001, %v911
          %v1018 = vmul.f32 %v1002, %v911
          %v1019 = vmul.f32 %v1003, %v911
          %v1020 = vmul.f32 %v1004, %v911
          %v1021 = vmul.f32 %v1005, %v912
          %v1022 = vmul.f32 %v1006, %v912
          %v1023 = vmul.f32 %v1007, %v912
          %v1024 = vmul.f32 %v1008, %v912
          %v1025 = vmul.f32 %v1009, %v913
          %v1026 = vmul.f32 %v1010, %v913
          %v1027 = vmul.f32 %v1011, %v913
          %v1028 = vmul.f32 %v1012, %v913
          %v1029 = vmul.f32 %v1013, %v914
          %v1030 = vmul.f32 %v1014, %v914
          %v1031 = vmul.f32 %v1015, %v914
          %v1032 = vmul.f32 %v1016, %v914
          %v1033 = vadd.f32 %v1017, %v1021
          %v1034 = vadd.f32 %v1033, %v1025
          %v1035 = vadd.f32 %v1034, %v1029
          %v1036 = vrot.slane %v1035, 4
          %v1037 = vadd.f32 %v1035, %v1036
          %v1038 = vrot.slane %v1037, 2
          %v1039 = vadd.f32 %v1037, %v1038
          %v1040 = vrot.slane %v1039, 1
          %v1041 = vadd.f32 %v1039, %v1040
          %v1042 = vadd.f32 %v1018, %v1022
          %v1043 = vadd.f32 %v1042, %v1026
          %v1044 = vadd.f32 %v1043, %v1030
          %v1045 = vrot.slane %v1044, 4
          %v1046 = vadd.f32 %v1044, %v1045
          %v1047 = vrot.slane %v1046, 2
          %v1048 = vadd.f32 %v1046, %v1047
          %v1049 = vrot.slane %v1048, 1
          %v1050 = vadd.f32 %v1048, %v1049
          %v1051 = vadd.f32 %v1019, %v1023
          %v1052 = vadd.f32 %v1051, %v1027
          %v1053 = vadd.f32 %v1052, %v1031
          %v1054 = vrot.slane %v1053, 4
          %v1055 = vadd.f32 %v1053, %v1054
          %v1056 = vrot.slane %v1055, 2
          %v1057 = vadd.f32 %v1055, %v1056
          %v1058 = vrot.slane %v1057, 1
          %v1059 = vadd.f32 %v1057, %v1058
          %v1060 = vadd.f32 %v1020, %v1024
          %v1061 = vadd.f32 %v1060, %v1028
          %v1062 = vadd.f32 %v1061, %v1032
          %v1063 = vrot.slane %v1062, 4
          %v1064 = vadd.f32 %v1062, %v1063
          %v1065 = vrot.slane %v1064, 2
          %v1066 = vadd.f32 %v1064, %v1065
          %v1067 = vrot.slane %v1066, 1
          %v1068 = vadd.f32 %v1066, %v1067
          %v1073 = vcombine.low %v1041, %v1050
          %v1074 = vcombine.low %v1059, %v1068
          %v1076 = vunpack.c.l.s4 1966171168
          %v1077 = vunpack.c.0.s8 %v1076
          %v1078 = vlaneseq
          %v1079 = vshrl.u32 %v1078, 7
          %v1080 = vsub.s32 %v1077, %v1079
          %v1081 = vrot.slane %v1073, %v1080
          %v1083 = vunpack.c.l.s4 1966171168
          %v1084 = vunpack.c.0.s8 %v1083
          %v1085 = vlaneseq
          %v1086 = vshrl.u32 %v1085, 7
          %v1087 = vsub.s32 %v1084, %v1086
          %v1088 = vrot.slane %v1074, %v1087
          %v1089 = vcombine.low %v1081, %v1088
          %v1091 = vunpack.c.l.s4 1966171168
          %v1092 = vunpack.c.0.s8 %v1091
          %v1093 = vlaneseq
          %v1094 = vshrl.u32 %v1093, 7
          %v1095 = vsub.s32 %v1092, %v1094
          %v1096 = vrot.slane %v1089, %v1095
          %1098 = vst.msk [vmem:[%s357] sm:$0xf] %vm999, %v1096
        $region56: #{tpu_custom_call.1} parent=35 // pred_fallthru
          _
        %s1099 = sand.u32 %s146, 1
        %s1100 = scalar_lea.sflag [#allocation5], %s1099
        %s1101 = sand.u32 %s146, 1
        %s1102 = smul.addr %s1101, 64
        %s1103 = scalar_lea.vmem [#allocation9], %s1102
        %s1104 = sand.u32 %s30, 1
        %s1105 = scalar_lea.sflag [#allocation11], %s1104
        %s1106 = sand.u32 %s172, 1
        %s1107 = smul.addr %s1106, 4
        %s1108 = scalar_lea.vmem [#allocation10], %s1107
        %s1109 = sand.u32 %s30, 1
        %s1110 = scalar_lea.sflag [#allocation11], %s1109
        %s1111 = sand.u32 %s198, 1
        %s1112 = smul.addr %s1111, 4
        %s1113 = scalar_lea.vmem [#allocation12], %s1112
        // Predicated region
        $region57: #{tpu_custom_call.1} parent=35 // pred_check
          %p1114 = pneg %p156
        $region58: #{tpu_custom_call.1} parent=35 // pred_check_branch
          %1116 = sbr.rel (%p1114) target = $region60
        $region59: #{tpu_custom_call.1} parent=35 // pred_region
          %s1117 = smul.u32 4, %s34
          %s1119 = ssub.s32 1024, 1024
          %1120 = vsyncadd %s1100, %s1119
          %s1121 = smul.addr %s1117, 4
          %s1122 = smul.addr %s1121, 64
          %s1123 = scalar_lea.hbm %s4, %s1122
          %s1124 = sshll.u32 %s1103, 4
          %s1125 = int_to_ptr.vmem [resolvable:$true] %s1124
          %1130 = dma.vmem_to_hbm [thread:$0]  %s1125, 1024, %s1123, %s1100, 256, 256, 16
        $region60: #{tpu_custom_call.1} parent=35 // pred_fallthru
          _
        // Predicated region
        $region61: #{tpu_custom_call.1} parent=35 // pred_check
          %p1131 = pneg %p182
        $region62: #{tpu_custom_call.1} parent=35 // pred_check_branch
          %1133 = sbr.rel (%p1131) target = $region64
        $region63: #{tpu_custom_call.1} parent=35 // pred_region
          %s1135 = ssub.s32 64, 64
          %1136 = vsyncadd %s1105, %s1135
          %s1137 = smul.addr %s34, 4
          %s1138 = smul.addr %s1137, 16
          %s1139 = scalar_lea.hbm %s5, %s1138
          %s1141 = sshll.u32 %s1108, 4
          %s1142 = int_to_ptr.vmem [resolvable:$true] %s1141
          %1144 = dma.vmem_to_hbm [thread:$0]  %s1142, 64, %s1139, %s1105
        $region64: #{tpu_custom_call.1} parent=35 // pred_fallthru
          _
        // Predicated region
        $region65: #{tpu_custom_call.1} parent=35 // pred_check
          %p1145 = pneg %p208
        $region66: #{tpu_custom_call.1} parent=35 // pred_check_branch
          %1147 = sbr.rel (%p1145) target = $region68
        $region67: #{tpu_custom_call.1} parent=35 // pred_region
          %s1149 = ssub.s32 64, 64
          %1150 = vsyncadd %s1110, %s1149
          %s1151 = smul.addr %s34, 4
          %s1152 = smul.addr %s1151, 16
          %s1153 = scalar_lea.hbm %s6, %s1152
          %s1155 = sshll.u32 %s1113, 4
          %s1156 = int_to_ptr.vmem [resolvable:$true] %s1155
          %1158 = dma.vmem_to_hbm [thread:$0]  %s1156, 64, %s1153, %s1110
        $region68: #{tpu_custom_call.1} parent=35 // pred_fallthru
          _
      $region36: #{tpu_custom_call.1} parent=5 // pred_fallthru
        _
      %p1159 = scmp.le.s32.totalorder 2, %s25
      // Predicated region
      $region69: #{tpu_custom_call.1} parent=5 // pred_check
        %p1160 = pneg %p1159
      $region70: #{tpu_custom_call.1} parent=5 // pred_check_branch
        %1162 = sbr.rel (%p1160) target = $region72
      $region71: #{tpu_custom_call.1} parent=5 // pred_region
        %s1163 = ssub.s32 %s25, 2
        // Predicated region
        $region73: #{tpu_custom_call.1} parent=71 // pred_check
          %p1164 = pneg %p162
        $region74: #{tpu_custom_call.1} parent=71 // pred_check_branch
          %1166 = sbr.rel (%p1164) target = $region76
        $region75: #{tpu_custom_call.1} parent=71 // pred_region
          %s1167 = sand.u32 %s147, 1
          %s1168 = scalar_lea.sflag [#allocation5], %s1167
          %s1169 = sand.u32 %s147, 1
          %s1170 = smul.addr %s1169, 64
          %s1171 = scalar_lea.vmem [#allocation9], %s1170
          %1172 = dma.done %s1168, 1024
        $region76: #{tpu_custom_call.1} parent=71 // pred_fallthru
          _
        // Predicated region
        $region77: #{tpu_custom_call.1} parent=71 // pred_check
          %p1173 = pneg %p188
        $region78: #{tpu_custom_call.1} parent=71 // pred_check_branch
          %1175 = sbr.rel (%p1173) target = $region80
        $region79: #{tpu_custom_call.1} parent=71 // pred_region
          %s1176 = sand.u32 %s31, 1
          %s1177 = scalar_lea.sflag [#allocation11], %s1176
          %s1178 = sand.u32 %s173, 1
          %s1179 = smul.addr %s1178, 4
          %s1180 = scalar_lea.vmem [#allocation10], %s1179
          %1181 = dma.done %s1177, 64
        $region80: #{tpu_custom_call.1} parent=71 // pred_fallthru
          _
        // Predicated region
        $region81: #{tpu_custom_call.1} parent=71 // pred_check
          %p1182 = pneg %p214
        $region82: #{tpu_custom_call.1} parent=71 // pred_check_branch
          %1184 = sbr.rel (%p1182) target = $region84
        $region83: #{tpu_custom_call.1} parent=71 // pred_region
          %s1185 = sand.u32 %s31, 1
          %s1186 = scalar_lea.sflag [#allocation11], %s1185
          %s1187 = sand.u32 %s199, 1
          %s1188 = smul.addr %s1187, 4
          %s1189 = scalar_lea.vmem [#allocation12], %s1188
          %1190 = dma.done %s1186, 64
        $region84: #{tpu_custom_call.1} parent=71 // pred_fallthru
          _
      $region72: #{tpu_custom_call.1} parent=5 // pred_fallthru
        _
    $region6: #{tpu_custom_call.1} parent=1 // loop_footer
      %s29 = sadd.s32 1, %s25
    $region7: #{tpu_custom_call.1} parent=1 // loop_footer_branch
      %24 = sbr.rel target = $region3
    $region8: #{tpu_custom_call.1} parent=1 // loop_exit
      _
    %1191 = vsyncpa [#allocation4], 1
    %s1192 = scalar_lea.sflag [#allocation4], 1
    %1193 = vsyncpa %s1192, 1
    %1194 = vsyncpa [#allocation7], 1
    %s1195 = scalar_lea.sflag [#allocation7], 1
    %1196 = vsyncpa %s1195, 1
    %1197 = vsyncpa [#allocation5], 1
    %s1198 = scalar_lea.sflag [#allocation5], 1
    %1199 = vsyncpa %s1198, 1
    %1200 = vsyncpa [#allocation11], 1
    %s1201 = scalar_lea.sflag [#allocation11], 1
    %1202 = vsyncpa %s1201, 1

</llo_original>
